<compile_context>
chip_gen: v7x
topology: tpu7x:2x2x1
jax: 0.10.0
libtpu: 0.0.40
codegen_flags: <defaults>
</compile_context>

<pallas_src>
import functools

import jax
import jax.numpy as jnp
from jax.experimental import pallas as pl
from jax.experimental.pallas import tpu as pltpu

LANE = 128
SUBLANE = 8


def _round_up(x, m):
    return (x + m - 1) // m * m


# --------------------------------------------------------------------------
# Kernel
# --------------------------------------------------------------------------
def looking_kernel(x_ref, w1_ref, t1_ref, sw_ref, st_ref, w2_ref, b2_ref,
                   out_ref):
    """Full LookingModel forward for one (tb, input_size) batch tile.

    Weights arrive bf16 (folded BN+bias) and stay bf16 at the MXU; activations
    are f32-resident and cast to bf16 only at each dot operand; accumulation
    is f32.  Output is transposed so real logits land lane-dense.
    """
    f32 = jnp.float32
    bf16 = jnp.bfloat16

    tb = x_ref.shape[0]
    in_size = x_ref.shape[1]
    k_pad = w1_ref.shape[0]

    # Load the (tb, input_size) tile and zero-pad the feature axis up to the
    # lane-dense contraction width of w1 (guarantees the padded lanes are
    # real zeros, not stale VMEM), then cast to bf16 for the MXU.
    x = x_ref[...]
    if in_size < k_pad:
        x = jnp.concatenate(
            [x, jnp.zeros((tb, k_pad - in_size), x.dtype)], axis=1)
    x = x.astype(bf16)

    # First stage: bf16xbf16 matmul (f32 accumulate), folded BN shift, relu.
    y = jnp.dot(x, w1_ref[...], preferred_element_type=f32) + t1_ref[...]
    y = jnp.maximum(y, 0.0)                     # f32-resident activation

    # Residual Linear blocks (num_stage is static -> unrolled Python loop;
    # only bf16 weights + one f32 activation live per step).
    num_stage = sw_ref.shape[0]
    for i in range(num_stage):
        z = jnp.dot(y.astype(bf16), sw_ref[i, 0],
                    preferred_element_type=f32) + st_ref[i, 0]
        z = jnp.maximum(z, 0.0)
        z = jnp.dot(z.astype(bf16), sw_ref[i, 1],
                    preferred_element_type=f32) + st_ref[i, 1]
        z = jnp.maximum(z, 0.0)
        y = y + z                               # residual add in f32

    # Output head (128 padded cols for the MXU) -> sigmoid -> transpose so the
    # real logits become lane-dense rows: store an (OUT_ROWS, tb) block
    # instead of (tb, 128), cutting writeback traffic ~16x.
    o = jnp.dot(y.astype(bf16), w2_ref[...],
                preferred_element_type=f32) + b2_ref[...]
    o = jax.nn.sigmoid(o)                       # (tb, 128) f32
    ot = jnp.transpose(o)                       # (128, tb), XLU transpose
    out_ref[...] = ot[: out_ref.shape[0], :].astype(out_ref.dtype)


# --------------------------------------------------------------------------
# Host-side parameter preparation (done ONCE, not per forward call)
# --------------------------------------------------------------------------
def fold_params(params, input_size, output_size, weight_dtype=jnp.bfloat16):
    """Fold BN scale/shift + bias into weights, pad to lane-dense shapes."""
    f32 = jnp.float32
    k_pad = _round_up(max(input_size, LANE), LANE)
    head_pad = _round_up(max(output_size, LANE), LANE)
    H = params["w1"].shape[1]

    # First stage: scale columns of w1 by BN scale; fold bias into shift.
    w1f = params["w1"] * params["s1"]                       # (in, H)
    t1f = params["b1"] * params["s1"] + params["t1"]        # (1, H)
    w1p = jnp.zeros((k_pad, H), f32).at[:input_size].set(w1f)

    # Residual stages: same fold per inner linear.
    swf = params["sw"] * params["ss"]                       # (NS, 2, H, H)
    stf = params["sb"] * params["ss"] + params["st"]        # (NS, 2, 1, H)

    # Output head: pad columns to a lane-dense width (zeros -> padded logits 0).
    w2p = jnp.zeros((H, head_pad), f32).at[:, :output_size].set(params["w2"])
    b2p = jnp.zeros((1, head_pad), f32).at[:, :output_size].set(params["b2"])

    return dict(
        w1=w1p.astype(weight_dtype),
        t1=t1f.astype(f32),
        sw=swf.astype(weight_dtype),
        st=stf.astype(f32),
        w2=w2p.astype(weight_dtype),
        b2=b2p.astype(f32),
    )


# --------------------------------------------------------------------------
# Forward wrapper
# --------------------------------------------------------------------------
def _choose_batch_tile(B, batch_tile):
    """Batch tile: multiple of 8; for batches >= 256 rows use 128-multiple
    tiles with >= 2 grid steps (megacore on v7x, lane-dense transposed output
    blocks); otherwise a single tile covering the (8-padded) batch."""
    b8 = _round_up(B, SUBLANE)
    if b8 < 2 * LANE:
        return b8
    half = _round_up((b8 + 1) // 2, LANE)
    return max(LANE, min(_round_up(batch_tile, LANE), half))


@functools.partial(jax.jit, static_argnames=("output_size", "batch_tile"))
def looking_forward(x, fparams, output_size=1, batch_tile=512):
    """Runs the LookingModel forward pass via a batch-gridded Pallas call."""
    B, in_size = x.shape
    w1, t1 = fparams["w1"], fparams["t1"]
    sw, st = fparams["sw"], fparams["st"]
    w2, b2 = fparams["w2"], fparams["b2"]

    k_pad, H = w1.shape
    head_pad = w2.shape[1]
    ns = sw.shape[0]
    out_rows = _round_up(max(output_size, SUBLANE), SUBLANE)

    tb = _choose_batch_tile(B, batch_tile)
    b_pad = _round_up(_round_up(B, SUBLANE), tb)
    grid = (b_pad // tb,)

    const2 = lambda i: (0, 0)
    const4 = lambda i: (0, 0, 0, 0)

    x = x.astype(jnp.float32)   # no host-side pad copy; x passed as-is

    out_t = pl.pallas_call(
        looking_kernel,
        out_shape=jax.ShapeDtypeStruct((out_rows, b_pad), jnp.float32),
        grid_spec=pltpu.PrefetchScalarGridSpec(
            num_scalar_prefetch=0,
            grid=grid,
            in_specs=[
                pl.BlockSpec((tb, in_size), lambda i: (i, 0)),   # x tile (pipelined)
                pl.BlockSpec((k_pad, H), const2),                # w1 (VMEM-resident)
                pl.BlockSpec((1, H), const2),                    # t1
                pl.BlockSpec((ns, 2, H, H), const4),             # stage weights
                pl.BlockSpec((ns, 2, 1, H), const4),             # stage shifts
                pl.BlockSpec((H, head_pad), const2),             # w2
                pl.BlockSpec((1, head_pad), const2),             # b2
            ],
            out_specs=pl.BlockSpec((out_rows, tb), lambda i: (0, i)),
        ),
        compiler_params=pltpu.CompilerParams(
            dimension_semantics=("parallel",),   # megacore batch sharding (v7x)
        ),
    )(x, w1, t1, sw, st, w2, b2)

    # (out_rows, b_pad) transposed logits -> (B, output_size)
    return out_t[:output_size, :B].T


# --------------------------------------------------------------------------
# Synthetic parameters + references
# --------------------------------------------------------------------------
def init_params(key, input_size, linear_size, output_size, num_stage):
    """Deterministic synthetic parameters (weights + eval-mode BN scale/shift)."""
    keys = jax.random.split(key, 8)
    eps = 1e-5

    def bn_fold(kg, kb, km, kv, n):
        gamma = 1.0 + 0.1 * jax.random.normal(kg, (n,), jnp.float32)
        beta = 0.1 * jax.random.normal(kb, (n,), jnp.float32)
        running_mean = 0.1 * jax.random.normal(km, (n,), jnp.float32)
        running_var = 1.0 + 0.1 * jax.random.uniform(kv, (n,), jnp.float32)
        scale = gamma / jnp.sqrt(running_var + eps)
        shift = beta - running_mean * scale
        return scale.reshape(1, n), shift.reshape(1, n)

    H = linear_size
    w1 = 0.05 * jax.random.normal(keys[0], (input_size, H), jnp.float32)
    b1 = 0.05 * jax.random.normal(keys[1], (1, H), jnp.float32)
    s1, t1 = bn_fold(*jax.random.split(keys[2], 4), H)

    sw = 0.05 * jax.random.normal(keys[3], (num_stage, 2, H, H), jnp.float32)
    sb = 0.05 * jax.random.normal(keys[4], (num_stage, 2, 1, H), jnp.float32)
    ss = jnp.zeros((num_stage, 2, 1, H), jnp.float32)
    st = jnp.zeros((num_stage, 2, 1, H), jnp.float32)
    bn_keys = jax.random.split(keys[5], num_stage * 2 * 4).reshape(num_stage, 2, 4, 2)
    for i in range(num_stage):
        for j in range(2):
            s, t = bn_fold(bn_keys[i, j, 0], bn_keys[i, j, 1],
                           bn_keys[i, j, 2], bn_keys[i, j, 3], H)
            ss = ss.at[i, j].set(s)
            st = st.at[i, j].set(t)

    w2 = 0.05 * jax.random.normal(keys[6], (H, output_size), jnp.float32)
    b2 = 0.05 * jax.random.normal(keys[7], (1, output_size), jnp.float32)

    return dict(w1=w1, b1=b1, s1=s1, t1=t1, sw=sw, sb=sb, ss=ss, st=st,
                w2=w2, b2=b2)


def reference_forward_f32(x, params, num_stage):
    """Pure-JAX eval-mode reference with the original f32 (unfolded) params."""
    y = x @ params["w1"] + params["b1"]
    y = jnp.maximum(y * params["s1"] + params["t1"], 0.0)
    for i in range(num_stage):
        z = y @ params["sw"][i, 0] + params["sb"][i, 0]
        z = jnp.maximum(z * params["ss"][i, 0] + params["st"][i, 0], 0.0)
        z = z @ params["sw"][i, 1] + params["sb"][i, 1]
        z = jnp.maximum(z * params["ss"][i, 1] + params["st"][i, 1], 0.0)
        y = y + z
    o = y @ params["w2"] + params["b2"]
    return jax.nn.sigmoid(o)


def reference_forward_folded(x, fp, input_size, output_size, num_stage):
    """Pure-JAX reference mimicking the kernel's bf16-operand / f32-accum dots."""
    f32, bf16 = jnp.float32, jnp.bfloat16
    k_pad = fp["w1"].shape[0]
    xp = jnp.zeros((x.shape[0], k_pad), f32).at[:, :input_size].set(x.astype(f32))
    y = jnp.dot(xp.astype(bf16), fp["w1"], preferred_element_type=f32) + fp["t1"]
    y = jnp.maximum(y, 0.0)
    for i in range(num_stage):
        z = jnp.dot(y.astype(bf16), fp["sw"][i, 0],
                    preferred_element_type=f32) + fp["st"][i, 0]
        z = jnp.maximum(z, 0.0)
        z = jnp.dot(z.astype(bf16), fp["sw"][i, 1],
                    preferred_element_type=f32) + fp["st"][i, 1]
        z = jnp.maximum(z, 0.0)
        y = y + z
    o = jnp.dot(y.astype(bf16), fp["w2"], preferred_element_type=f32) + fp["b2"]
    return jax.nn.sigmoid(o)[:, :output_size]


# --------------------------------------------------------------------------
if __name__ == "__main__":
    INPUT_SIZE = 51       # full-pose input (per the module docstring)
    LINEAR_SIZE = 256
    OUTPUT_SIZE = 1
    NUM_STAGE = 3
    BATCH = 8

    key = jax.random.PRNGKey(0)
    k_x, k_p, k_x2 = jax.random.split(key, 3)
    x = jax.random.normal(k_x, (BATCH, INPUT_SIZE), jnp.float32)
    params = init_params(k_p, INPUT_SIZE, LINEAR_SIZE, OUTPUT_SIZE, NUM_STAGE)
    fparams = fold_params(params, INPUT_SIZE, OUTPUT_SIZE)

    # Small-batch run (single grid step).
    out = looking_forward(x, fparams, output_size=OUTPUT_SIZE)
    out = jax.block_until_ready(out)
    assert out.shape == (BATCH, OUTPUT_SIZE)

    ref_folded = reference_forward_folded(x, fparams, INPUT_SIZE, OUTPUT_SIZE, NUM_STAGE)
    ref_f32 = reference_forward_f32(x, params, NUM_STAGE)
    assert jnp.allclose(out, ref_folded, atol=5e-3, rtol=5e-3), "mismatch vs folded ref"
    assert jnp.allclose(out, ref_f32, atol=3e-2, rtol=3e-2), "mismatch vs f32 ref"

    # Larger batch: exercises >= 2 grid steps (megacore path) + a partial
    # last batch block (no host padding of x).
    B2 = 300
    x2 = jax.random.normal(k_x2, (B2, INPUT_SIZE), jnp.float32)
    out2 = looking_forward(x2, fparams, output_size=OUTPUT_SIZE)
    out2 = jax.block_until_ready(out2)
    ref2 = reference_forward_folded(x2, fparams, INPUT_SIZE, OUTPUT_SIZE, NUM_STAGE)
    assert out2.shape == (B2, OUTPUT_SIZE)
    assert jnp.allclose(out2, ref2, atol=5e-3, rtol=5e-3), "mismatch vs folded ref (gridded)"

    print("KERNEL_OK")
</pallas_src>

<mosaic_0001>
module attributes {stable_mosaic.version = 11 : i64} {
  func.func @looking_kernel(%arg0: i32, %arg1: memref<8x51xf32, #tpu.memory_space<vmem>>, %arg2: memref<128x256xbf16, #tpu.memory_space<vmem>>, %arg3: memref<1x256xf32, #tpu.memory_space<vmem>>, %arg4: memref<3x2x256x256xbf16, #tpu.memory_space<vmem>>, %arg5: memref<3x2x1x256xf32, #tpu.memory_space<vmem>>, %arg6: memref<256x128xbf16, #tpu.memory_space<vmem>>, %arg7: memref<1x128xf32, #tpu.memory_space<vmem>>, %arg8: memref<8x8xf32, #tpu.memory_space<vmem>>) attributes {dimension_semantics = [#tpu.dimension_semantics<parallel>], iteration_bounds = array<i64: 1>, scalar_prefetch = 0 : i64, scratch_operands = 0 : i64, tpu.core_type = #tpu.core_type<tc>, window_params = [{transform_indices = @transform_0, window_bounds = array<i64: 8, 51>}, {pipeline_mode = #tpu.pipeline_mode<synchronous>, transform_indices = @transform_1, window_bounds = array<i64: 128, 256>}, {pipeline_mode = #tpu.pipeline_mode<synchronous>, transform_indices = @transform_2, window_bounds = array<i64: 1, 256>}, {pipeline_mode = #tpu.pipeline_mode<synchronous>, transform_indices = @transform_3, window_bounds = array<i64: 3, 2, 256, 256>}, {pipeline_mode = #tpu.pipeline_mode<synchronous>, transform_indices = @transform_4, window_bounds = array<i64: 3, 2, 1, 256>}, {pipeline_mode = #tpu.pipeline_mode<synchronous>, transform_indices = @transform_5, window_bounds = array<i64: 256, 128>}, {pipeline_mode = #tpu.pipeline_mode<synchronous>, transform_indices = @transform_6, window_bounds = array<i64: 1, 128>}, {transform_indices = @transform_7, window_bounds = array<i64: 8, 8>}]} {
    %c0 = arith.constant 0 : index
    %c0_0 = arith.constant 0 : index
    %0 = vector.load %arg1[%c0, %c0_0] : memref<8x51xf32, #tpu.memory_space<vmem>>, vector<8x51xf32>
    %cst = arith.constant 0.000000e+00 : f32
    %1 = vector.broadcast %cst : f32 to vector<8x77xf32>
    %2 = tpu.concatenate %0, %1 in 1 : vector<8x51xf32>, vector<8x77xf32> -> vector<8x128xf32>
    %3 = arith.truncf %2 : vector<8x128xf32> to vector<8x128xbf16>
    %c0_1 = arith.constant 0 : index
    %c0_2 = arith.constant 0 : index
    %4 = vector.load %arg2[%c0_1, %c0_2] : memref<128x256xbf16, #tpu.memory_space<vmem>>, vector<128x256xbf16>
    %cst_3 = arith.constant dense<0.000000e+00> : vector<8x256xf32>
    %5 = tpu.matmul %3, %4, %cst_3 {dimension_numbers = #tpu.dot_dimension_numbers<[1], [0], [0], [1], [0, 0, 1, 1], [], []>} : vector<8x128xbf16>, vector<128x256xbf16>, vector<8x256xf32> -> vector<8x256xf32>
    %c0_4 = arith.constant 0 : index
    %c0_5 = arith.constant 0 : index
    %6 = vector.load %arg3[%c0_4, %c0_5] : memref<1x256xf32, #tpu.memory_space<vmem>>, vector<1x256xf32>
    %7 = vector.broadcast %6 : vector<1x256xf32> to vector<8x256xf32>
    %8 = arith.addf %5, %7 : vector<8x256xf32>
    %cst_6 = arith.constant 0.000000e+00 : f32
    %9 = vector.broadcast %cst_6 : f32 to vector<8x256xf32>
    %10 = arith.maximumf %8, %9 : vector<8x256xf32>
    %11 = arith.truncf %10 : vector<8x256xf32> to vector<8x256xbf16>
    %c0_7 = arith.constant 0 : index
    %c0_8 = arith.constant 0 : index
    %c0_9 = arith.constant 0 : index
    %c0_10 = arith.constant 0 : index
    %12 = vector.load %arg4[%c0_7, %c0_8, %c0_9, %c0_10] : memref<3x2x256x256xbf16, #tpu.memory_space<vmem>>, vector<1x1x256x256xbf16>
    %13 = vector.shape_cast %12 : vector<1x1x256x256xbf16> to vector<256x256xbf16>
    %cst_11 = arith.constant dense<0.000000e+00> : vector<8x256xf32>
    %14 = tpu.matmul %11, %13, %cst_11 {dimension_numbers = #tpu.dot_dimension_numbers<[1], [0], [0], [1], [0, 0, 1, 1], [], []>} : vector<8x256xbf16>, vector<256x256xbf16>, vector<8x256xf32> -> vector<8x256xf32>
    %c0_12 = arith.constant 0 : index
    %c0_13 = arith.constant 0 : index
    %c0_14 = arith.constant 0 : index
    %c0_15 = arith.constant 0 : index
    %15 = vector.load %arg5[%c0_12, %c0_13, %c0_14, %c0_15] : memref<3x2x1x256xf32, #tpu.memory_space<vmem>>, vector<1x1x1x256xf32>
    %16 = vector.shape_cast %15 : vector<1x1x1x256xf32> to vector<1x256xf32>
    %17 = vector.broadcast %16 : vector<1x256xf32> to vector<8x256xf32>
    %18 = arith.addf %14, %17 : vector<8x256xf32>
    %cst_16 = arith.constant 0.000000e+00 : f32
    %19 = vector.broadcast %cst_16 : f32 to vector<8x256xf32>
    %20 = arith.maximumf %18, %19 : vector<8x256xf32>
    %21 = arith.truncf %20 : vector<8x256xf32> to vector<8x256xbf16>
    %c0_17 = arith.constant 0 : index
    %c1 = arith.constant 1 : index
    %c0_18 = arith.constant 0 : index
    %c0_19 = arith.constant 0 : index
    %22 = vector.load %arg4[%c0_17, %c1, %c0_18, %c0_19] : memref<3x2x256x256xbf16, #tpu.memory_space<vmem>>, vector<1x1x256x256xbf16>
    %23 = vector.shape_cast %22 : vector<1x1x256x256xbf16> to vector<256x256xbf16>
    %cst_20 = arith.constant dense<0.000000e+00> : vector<8x256xf32>
    %24 = tpu.matmul %21, %23, %cst_20 {dimension_numbers = #tpu.dot_dimension_numbers<[1], [0], [0], [1], [0, 0, 1, 1], [], []>} : vector<8x256xbf16>, vector<256x256xbf16>, vector<8x256xf32> -> vector<8x256xf32>
    %c0_21 = arith.constant 0 : index
    %c1_22 = arith.constant 1 : index
    %c0_23 = arith.constant 0 : index
    %c0_24 = arith.constant 0 : index
    %25 = vector.load %arg5[%c0_21, %c1_22, %c0_23, %c0_24] : memref<3x2x1x256xf32, #tpu.memory_space<vmem>>, vector<1x1x1x256xf32>
    %26 = vector.shape_cast %25 : vector<1x1x1x256xf32> to vector<1x256xf32>
    %27 = vector.broadcast %26 : vector<1x256xf32> to vector<8x256xf32>
    %28 = arith.addf %24, %27 : vector<8x256xf32>
    %cst_25 = arith.constant 0.000000e+00 : f32
    %29 = vector.broadcast %cst_25 : f32 to vector<8x256xf32>
    %30 = arith.maximumf %28, %29 : vector<8x256xf32>
    %31 = arith.addf %10, %30 : vector<8x256xf32>
    %32 = arith.truncf %31 : vector<8x256xf32> to vector<8x256xbf16>
    %c1_26 = arith.constant 1 : index
    %c0_27 = arith.constant 0 : index
    %c0_28 = arith.constant 0 : index
    %c0_29 = arith.constant 0 : index
    %33 = vector.load %arg4[%c1_26, %c0_27, %c0_28, %c0_29] : memref<3x2x256x256xbf16, #tpu.memory_space<vmem>>, vector<1x1x256x256xbf16>
    %34 = vector.shape_cast %33 : vector<1x1x256x256xbf16> to vector<256x256xbf16>
    %cst_30 = arith.constant dense<0.000000e+00> : vector<8x256xf32>
    %35 = tpu.matmul %32, %34, %cst_30 {dimension_numbers = #tpu.dot_dimension_numbers<[1], [0], [0], [1], [0, 0, 1, 1], [], []>} : vector<8x256xbf16>, vector<256x256xbf16>, vector<8x256xf32> -> vector<8x256xf32>
    %c1_31 = arith.constant 1 : index
    %c0_32 = arith.constant 0 : index
    %c0_33 = arith.constant 0 : index
    %c0_34 = arith.constant 0 : index
    %36 = vector.load %arg5[%c1_31, %c0_32, %c0_33, %c0_34] : memref<3x2x1x256xf32, #tpu.memory_space<vmem>>, vector<1x1x1x256xf32>
    %37 = vector.shape_cast %36 : vector<1x1x1x256xf32> to vector<1x256xf32>
    %38 = vector.broadcast %37 : vector<1x256xf32> to vector<8x256xf32>
    %39 = arith.addf %35, %38 : vector<8x256xf32>
    %cst_35 = arith.constant 0.000000e+00 : f32
    %40 = vector.broadcast %cst_35 : f32 to vector<8x256xf32>
    %41 = arith.maximumf %39, %40 : vector<8x256xf32>
    %42 = arith.truncf %41 : vector<8x256xf32> to vector<8x256xbf16>
    %c1_36 = arith.constant 1 : index
    %c1_37 = arith.constant 1 : index
    %c0_38 = arith.constant 0 : index
    %c0_39 = arith.constant 0 : index
    %43 = vector.load %arg4[%c1_36, %c1_37, %c0_38, %c0_39] : memref<3x2x256x256xbf16, #tpu.memory_space<vmem>>, vector<1x1x256x256xbf16>
    %44 = vector.shape_cast %43 : vector<1x1x256x256xbf16> to vector<256x256xbf16>
    %cst_40 = arith.constant dense<0.000000e+00> : vector<8x256xf32>
    %45 = tpu.matmul %42, %44, %cst_40 {dimension_numbers = #tpu.dot_dimension_numbers<[1], [0], [0], [1], [0, 0, 1, 1], [], []>} : vector<8x256xbf16>, vector<256x256xbf16>, vector<8x256xf32> -> vector<8x256xf32>
    %c1_41 = arith.constant 1 : index
    %c1_42 = arith.constant 1 : index
    %c0_43 = arith.constant 0 : index
    %c0_44 = arith.constant 0 : index
    %46 = vector.load %arg5[%c1_41, %c1_42, %c0_43, %c0_44] : memref<3x2x1x256xf32, #tpu.memory_space<vmem>>, vector<1x1x1x256xf32>
    %47 = vector.shape_cast %46 : vector<1x1x1x256xf32> to vector<1x256xf32>
    %48 = vector.broadcast %47 : vector<1x256xf32> to vector<8x256xf32>
    %49 = arith.addf %45, %48 : vector<8x256xf32>
    %cst_45 = arith.constant 0.000000e+00 : f32
    %50 = vector.broadcast %cst_45 : f32 to vector<8x256xf32>
    %51 = arith.maximumf %49, %50 : vector<8x256xf32>
    %52 = arith.addf %31, %51 : vector<8x256xf32>
    %53 = arith.truncf %52 : vector<8x256xf32> to vector<8x256xbf16>
    %c2 = arith.constant 2 : index
    %c0_46 = arith.constant 0 : index
    %c0_47 = arith.constant 0 : index
    %c0_48 = arith.constant 0 : index
    %54 = vector.load %arg4[%c2, %c0_46, %c0_47, %c0_48] : memref<3x2x256x256xbf16, #tpu.memory_space<vmem>>, vector<1x1x256x256xbf16>
    %55 = vector.shape_cast %54 : vector<1x1x256x256xbf16> to vector<256x256xbf16>
    %cst_49 = arith.constant dense<0.000000e+00> : vector<8x256xf32>
    %56 = tpu.matmul %53, %55, %cst_49 {dimension_numbers = #tpu.dot_dimension_numbers<[1], [0], [0], [1], [0, 0, 1, 1], [], []>} : vector<8x256xbf16>, vector<256x256xbf16>, vector<8x256xf32> -> vector<8x256xf32>
    %c2_50 = arith.constant 2 : index
    %c0_51 = arith.constant 0 : index
    %c0_52 = arith.constant 0 : index
    %c0_53 = arith.constant 0 : index
    %57 = vector.load %arg5[%c2_50, %c0_51, %c0_52, %c0_53] : memref<3x2x1x256xf32, #tpu.memory_space<vmem>>, vector<1x1x1x256xf32>
    %58 = vector.shape_cast %57 : vector<1x1x1x256xf32> to vector<1x256xf32>
    %59 = vector.broadcast %58 : vector<1x256xf32> to vector<8x256xf32>
    %60 = arith.addf %56, %59 : vector<8x256xf32>
    %cst_54 = arith.constant 0.000000e+00 : f32
    %61 = vector.broadcast %cst_54 : f32 to vector<8x256xf32>
    %62 = arith.maximumf %60, %61 : vector<8x256xf32>
    %63 = arith.truncf %62 : vector<8x256xf32> to vector<8x256xbf16>
    %c2_55 = arith.constant 2 : index
    %c1_56 = arith.constant 1 : index
    %c0_57 = arith.constant 0 : index
    %c0_58 = arith.constant 0 : index
    %64 = vector.load %arg4[%c2_55, %c1_56, %c0_57, %c0_58] : memref<3x2x256x256xbf16, #tpu.memory_space<vmem>>, vector<1x1x256x256xbf16>
    %65 = vector.shape_cast %64 : vector<1x1x256x256xbf16> to vector<256x256xbf16>
    %cst_59 = arith.constant dense<0.000000e+00> : vector<8x256xf32>
    %66 = tpu.matmul %63, %65, %cst_59 {dimension_numbers = #tpu.dot_dimension_numbers<[1], [0], [0], [1], [0, 0, 1, 1], [], []>} : vector<8x256xbf16>, vector<256x256xbf16>, vector<8x256xf32> -> vector<8x256xf32>
    %c2_60 = arith.constant 2 : index
    %c1_61 = arith.constant 1 : index
    %c0_62 = arith.constant 0 : index
    %c0_63 = arith.constant 0 : index
    %67 = vector.load %arg5[%c2_60, %c1_61, %c0_62, %c0_63] : memref<3x2x1x256xf32, #tpu.memory_space<vmem>>, vector<1x1x1x256xf32>
    %68 = vector.shape_cast %67 : vector<1x1x1x256xf32> to vector<1x256xf32>
    %69 = vector.broadcast %68 : vector<1x256xf32> to vector<8x256xf32>
    %70 = arith.addf %66, %69 : vector<8x256xf32>
    %cst_64 = arith.constant 0.000000e+00 : f32
    %71 = vector.broadcast %cst_64 : f32 to vector<8x256xf32>
    %72 = arith.maximumf %70, %71 : vector<8x256xf32>
    %73 = arith.addf %52, %72 : vector<8x256xf32>
    %74 = arith.truncf %73 : vector<8x256xf32> to vector<8x256xbf16>
    %c0_65 = arith.constant 0 : index
    %c0_66 = arith.constant 0 : index
    %75 = vector.load %arg6[%c0_65, %c0_66] : memref<256x128xbf16, #tpu.memory_space<vmem>>, vector<256x128xbf16>
    %cst_67 = arith.constant dense<0.000000e+00> : vector<8x128xf32>
    %76 = tpu.matmul %74, %75, %cst_67 {dimension_numbers = #tpu.dot_dimension_numbers<[1], [0], [0], [1], [0, 0, 1, 1], [], []>} : vector<8x256xbf16>, vector<256x128xbf16>, vector<8x128xf32> -> vector<8x128xf32>
    %c0_68 = arith.constant 0 : index
    %c0_69 = arith.constant 0 : index
    %77 = vector.load %arg7[%c0_68, %c0_69] : memref<1x128xf32, #tpu.memory_space<vmem>>, vector<1x128xf32>
    %78 = vector.broadcast %77 : vector<1x128xf32> to vector<8x128xf32>
    %79 = arith.addf %76, %78 : vector<8x128xf32>
    %80 = arith.negf %79 : vector<8x128xf32>
    %81 = math.exp %80 : vector<8x128xf32>
    %cst_70 = arith.constant 1.000000e+00 : f32
    %82 = vector.broadcast %cst_70 : f32 to vector<8x128xf32>
    %83 = arith.addf %82, %81 : vector<8x128xf32>
    %84 = arith.divf %82, %83 : vector<8x128xf32>
    %85 = tpu.transpose %84, [1, 0] : vector<8x128xf32> -> vector<128x8xf32>
    %86 = vector.extract_strided_slice %85 {offsets = [0, 0], sizes = [8, 8], strides = [1, 1]} : vector<128x8xf32> to vector<8x8xf32>
    %c0_71 = arith.constant 0 : index
    %c0_72 = arith.constant 0 : index
    %87 = vector.load %arg8[%c0_71, %c0_72] : memref<8x8xf32, #tpu.memory_space<vmem>>, vector<8x8xf32>
    tpu.vector_store %arg8[%c0_71, %c0_72], %86 {strides = array<i32>} : memref<8x8xf32, #tpu.memory_space<vmem>>, vector<8x8xf32>,
    return
  }
  func.func @transform_0(%arg0: i32) -> (i32, i32) {
    %c0_i32 = arith.constant 0 : i32
    %c0_i32_0 = arith.constant 0 : i32
    return %arg0, %c0_i32 : i32, i32
  }
  func.func @transform_1(%arg0: i32) -> (i32, i32) {
    %c0_i32 = arith.constant 0 : i32
    %c0_i32_0 = arith.constant 0 : i32
    %c0_i32_1 = arith.constant 0 : i32
    return %c0_i32, %c0_i32_0 : i32, i32
  }
  func.func @transform_2(%arg0: i32) -> (i32, i32) {
    %c0_i32 = arith.constant 0 : i32
    %c0_i32_0 = arith.constant 0 : i32
    %c0_i32_1 = arith.constant 0 : i32
    return %c0_i32, %c0_i32_0 : i32, i32
  }
  func.func @transform_3(%arg0: i32) -> (i32, i32, i32, i32) {
    %c0_i32 = arith.constant 0 : i32
    %c0_i32_0 = arith.constant 0 : i32
    %c0_i32_1 = arith.constant 0 : i32
    %c0_i32_2 = arith.constant 0 : i32
    %c0_i32_3 = arith.constant 0 : i32
    return %c0_i32, %c0_i32_0, %c0_i32_1, %c0_i32_2 : i32, i32, i32, i32
  }
  func.func @transform_4(%arg0: i32) -> (i32, i32, i32, i32) {
    %c0_i32 = arith.constant 0 : i32
    %c0_i32_0 = arith.constant 0 : i32
    %c0_i32_1 = arith.constant 0 : i32
    %c0_i32_2 = arith.constant 0 : i32
    %c0_i32_3 = arith.constant 0 : i32
    return %c0_i32, %c0_i32_0, %c0_i32_1, %c0_i32_2 : i32, i32, i32, i32
  }
  func.func @transform_5(%arg0: i32) -> (i32, i32) {
    %c0_i32 = arith.constant 0 : i32
    %c0_i32_0 = arith.constant 0 : i32
    %c0_i32_1 = arith.constant 0 : i32
    return %c0_i32, %c0_i32_0 : i32, i32
  }
  func.func @transform_6(%arg0: i32) -> (i32, i32) {
    %c0_i32 = arith.constant 0 : i32
    %c0_i32_0 = arith.constant 0 : i32
    %c0_i32_1 = arith.constant 0 : i32
    return %c0_i32, %c0_i32_0 : i32, i32
  }
  func.func @transform_7(%arg0: i32) -> (i32, i32) {
    %c0_i32 = arith.constant 0 : i32
    %c0_i32_0 = arith.constant 0 : i32
    return %c0_i32, %arg0 : i32, i32
  }
}

</mosaic_0001>

<llo_original>
// kernel: looking_forward.1
$region0: #{looking_forward.1}
  #allocation0 [shape = 'u32[]', space=smem, size = 0x4, offset = 0x4, fixed_abs, tag = 'smem constant byte address 0x4 - core index']
  #allocation1 [shape = 'u32[144,128]{1,0:T(1,128)}', space=vmem, size = 0x12000, scoped, tag = 'internal scratch']
  %s0 = inlined_call_operand.hbm [shape: f32[8,51], index: 0, kind: input, shape index: {}]
  %s1 = inlined_call_operand.hbm [shape: bf16[128,256], index: 1, kind: input, shape index: {}]
  %s2 = inlined_call_operand.vmem [shape: f32[1,256], index: 2, kind: input, shape index: {}]
  %s3 = inlined_call_operand.hbm [shape: bf16[3,2,256,256], index: 3, kind: input, shape index: {}]
  %s4 = inlined_call_operand.hbm [shape: f32[3,2,1,256], index: 4, kind: input, shape index: {}]
  %s5 = inlined_call_operand.hbm [shape: bf16[256,128], index: 5, kind: input, shape index: {}]
  %s6 = inlined_call_operand.vmem [shape: f32[1,128], index: 6, kind: input, shape index: {}]
  %s7 = inlined_call_operand.vmem [shape: f32[8,8], index: 7, kind: output, shape index: {}]
  %s8 = sld [smem:[#allocation0]]
  $region58: #{looking_forward.1} parent=0
    _
  %s10 = ssub.s32 1, %s8
  %s11 = scalar_select 0, %s10, %s8
  $region1: #{looking_forward.1} parent=0
    #allocation2 [shape = 'u8[4096]{0}', space=vmem, size = 0x1000, scoped, tag = 'input window, operand 0, single buffered']
    #allocation3 [shape = 's32[1]{0}', space=sflag, size = 0x4, scoped, tag = 'scoped memory for looking_forward.1']
    #allocation4 [shape = 'u8[65536]{0}', space=vmem, size = 0x10000, scoped, tag = 'input window, operand 1, single buffered']
    #allocation5 [shape = 's32[1]{0}', space=sflag, size = 0x4, scoped, tag = 'scoped memory for looking_forward.1']
    #allocation6 [shape = 'u8[786432]{0}', space=vmem, size = 0xc0000, scoped, tag = 'input window, operand 3, single buffered']
    #allocation7 [shape = 'u8[6144]{0}', space=vmem, size = 0x1800, scoped, tag = 'input window, operand 4, single buffered']
    #allocation8 [shape = 's32[1]{0}', space=sflag, size = 0x4, scoped, tag = 'scoped memory for looking_forward.1']
    #allocation9 [shape = 'u8[65536]{0}', space=vmem, size = 0x10000, scoped, tag = 'input window, operand 5, single buffered']
    %12 = vsyncpa [#allocation3], 0
    %13 = vsyncpa [#allocation5], 0
    %14 = vsyncpa [#allocation8], 0
    // Predicated region
    $region2: #{looking_forward.1} parent=1 // pred_check
      _
    $region3: #{looking_forward.1} parent=1 // pred_check_branch
      %16 = sbr.rel (0) target = $region5
    $region4: #{looking_forward.1} parent=1 // pred_region
      %s18 = ssub.s32 128, 128
      %19 = vsyncadd [#allocation3], %s18
      %s21 = sshll.u32 [#allocation2], 4
      %s22 = int_to_ptr.vmem [resolvable:$true] %s21
      %24 = dma.hbm_to_vmem [thread:$0]  %s0, 128, %s22, [#allocation3]
    $region5: #{looking_forward.1} parent=1 // pred_fallthru
      _
    // Predicated region
    $region6: #{looking_forward.1} parent=1 // pred_check
      _
    $region7: #{looking_forward.1} parent=1 // pred_check_branch
      %26 = sbr.rel (0) target = $region9
    $region8: #{looking_forward.1} parent=1 // pred_region
      %s28 = ssub.s32 2048, 2048
      %29 = vsyncadd [#allocation5], %s28
      %s30 = sshll.u32 [#allocation4], 4
      %s31 = int_to_ptr.vmem [resolvable:$true] %s30
      %36 = dma.hbm_to_vmem [thread:$0]  %s1, 2048, %s31, [#allocation5], 128, 128, 8
    $region9: #{looking_forward.1} parent=1 // pred_fallthru
      _
    // Predicated region
    $region10: #{looking_forward.1} parent=1 // pred_check
      _
    $region11: #{looking_forward.1} parent=1 // pred_check_branch
      %38 = sbr.rel (0) target = $region13
    $region12: #{looking_forward.1} parent=1 // pred_region
      _
    $region13: #{looking_forward.1} parent=1 // pred_fallthru
      _
    // Predicated region
    $region14: #{looking_forward.1} parent=1 // pred_check
      _
    $region15: #{looking_forward.1} parent=1 // pred_check_branch
      %40 = sbr.rel (0) target = $region17
    $region16: #{looking_forward.1} parent=1 // pred_region
      %s42 = ssub.s32 24576, 24576
      %43 = vsyncadd [#allocation5], %s42
      %s44 = sshll.u32 [#allocation6], 4
      %s45 = int_to_ptr.vmem [resolvable:$true] %s44
      %50 = dma.hbm_to_vmem [thread:$0]  %s3, 24576, %s45, [#allocation5], 128, 128, 8
    $region17: #{looking_forward.1} parent=1 // pred_fallthru
      _
    // Predicated region
    $region18: #{looking_forward.1} parent=1 // pred_check
      _
    $region19: #{looking_forward.1} parent=1 // pred_check_branch
      %52 = sbr.rel (0) target = $region21
    $region20: #{looking_forward.1} parent=1 // pred_region
      %s54 = ssub.s32 192, 192
      %55 = vsyncadd [#allocation8], %s54
      %s56 = sshll.u32 [#allocation7], 4
      %s57 = int_to_ptr.vmem [resolvable:$true] %s56
      %62 = dma.hbm_to_vmem [thread:$0]  %s4, 192, %s57, [#allocation8], 32, 32, 2
    $region21: #{looking_forward.1} parent=1 // pred_fallthru
      _
    // Predicated region
    $region22: #{looking_forward.1} parent=1 // pred_check
      _
    $region23: #{looking_forward.1} parent=1 // pred_check_branch
      %64 = sbr.rel (0) target = $region25
    $region24: #{looking_forward.1} parent=1 // pred_region
      %s66 = ssub.s32 2048, 2048
      %67 = vsyncadd [#allocation8], %s66
      %s68 = sshll.u32 [#allocation9], 4
      %s69 = int_to_ptr.vmem [resolvable:$true] %s68
      %74 = dma.hbm_to_vmem [thread:$0]  %s5, 2048, %s69, [#allocation8], 64, 64, 4
    $region25: #{looking_forward.1} parent=1 // pred_fallthru
      _
    // Predicated region
    $region26: #{looking_forward.1} parent=1 // pred_check
      _
    $region27: #{looking_forward.1} parent=1 // pred_check_branch
      %76 = sbr.rel (0) target = $region29
    $region28: #{looking_forward.1} parent=1 // pred_region
      _
    $region29: #{looking_forward.1} parent=1 // pred_fallthru
      _
    // Predicated region
    $region30: #{looking_forward.1} parent=1 // pred_check
      _
    $region31: #{looking_forward.1} parent=1 // pred_check_branch
      %78 = sbr.rel (0) target = $region33
    $region32: #{looking_forward.1} parent=1 // pred_region
      %79 = dma.done [#allocation3], 128
    $region33: #{looking_forward.1} parent=1 // pred_fallthru
      _
    // Predicated region
    $region34: #{looking_forward.1} parent=1 // pred_check
      _
    $region35: #{looking_forward.1} parent=1 // pred_check_branch
      %81 = sbr.rel (0) target = $region37
    $region36: #{looking_forward.1} parent=1 // pred_region
      %82 = dma.done [#allocation5], 2048
    $region37: #{looking_forward.1} parent=1 // pred_fallthru
      _
    // Predicated region
    $region38: #{looking_forward.1} parent=1 // pred_check
      _
    $region39: #{looking_forward.1} parent=1 // pred_check_branch
      %84 = sbr.rel (0) target = $region41
    $region40: #{looking_forward.1} parent=1 // pred_region
      %85 = dma.done [#allocation5], 24576
    $region41: #{looking_forward.1} parent=1 // pred_fallthru
      _
    // Predicated region
    $region42: #{looking_forward.1} parent=1 // pred_check
      _
    $region43: #{looking_forward.1} parent=1 // pred_check_branch
      %87 = sbr.rel (0) target = $region45
    $region44: #{looking_forward.1} parent=1 // pred_region
      %88 = dma.done [#allocation8], 192
    $region45: #{looking_forward.1} parent=1 // pred_fallthru
      _
    // Predicated region
    $region46: #{looking_forward.1} parent=1 // pred_check
      _
    $region47: #{looking_forward.1} parent=1 // pred_check_branch
      %90 = sbr.rel (0) target = $region49
    $region48: #{looking_forward.1} parent=1 // pred_region
      %91 = dma.done [#allocation8], 2048
    $region49: #{looking_forward.1} parent=1 // pred_fallthru
      _
    %v93 = vld [vmem:[#allocation2] sm:$0xff]
    %vm94 = vcmask 416768
    %v95 = vsel %vm94, %v93, 0.0
    %v96 = vpack.c.bf16 %v95, %v95
    %v97 = vld [vmem:[#allocation4] sm:$0xff]
    %v98 = vld [vmem:[#allocation4 + $0x8] sm:$0xff]
    %v99 = vld [vmem:[#allocation4 + $0x10] sm:$0xff]
    %v100 = vld [vmem:[#allocation4 + $0x18] sm:$0xff]
    %v101 = vld [vmem:[#allocation4 + $0x20] sm:$0xff]
    %v102 = vld [vmem:[#allocation4 + $0x28] sm:$0xff]
    %v103 = vld [vmem:[#allocation4 + $0x30] sm:$0xff]
    %v104 = vld [vmem:[#allocation4 + $0x38] sm:$0xff]
    %v105 = vld [vmem:[#allocation4 + $0x40] sm:$0xff]
    %v106 = vld [vmem:[#allocation4 + $0x48] sm:$0xff]
    %v107 = vld [vmem:[#allocation4 + $0x50] sm:$0xff]
    %v108 = vld [vmem:[#allocation4 + $0x58] sm:$0xff]
    %v109 = vld [vmem:[#allocation4 + $0x60] sm:$0xff]
    %v110 = vld [vmem:[#allocation4 + $0x68] sm:$0xff]
    %v111 = vld [vmem:[#allocation4 + $0x70] sm:$0xff]
    %v112 = vld [vmem:[#allocation4 + $0x78] sm:$0xff]
    %v113 = vld [vmem:[%s2] sm:$0x3]
    %v115 = vlaneseq
    %v116 = vshrl.u32 %v115, 7
    %v117 = vsub.s32 0, %v116
    %v118 = vrot.slane %v113, %v117
    %v119 = vlaneseq
    %v120 = vshrl.u32 %v119, 7
    %v121 = vsub.s32 1, %v120
    %v122 = vrot.slane %v113, %v121
    %v141 = vunpack.c.l.b16 %v97
    %v142 = vunpack.c.h.b16 %v97
    %v143 = vunpack.c.l.b16 %v98
    %v144 = vunpack.c.h.b16 %v98
    %v145 = vunpack.c.l.b16 %v99
    %v146 = vunpack.c.h.b16 %v99
    %v147 = vunpack.c.l.b16 %v100
    %v148 = vunpack.c.h.b16 %v100
    %v149 = vunpack.c.l.b16 %v101
    %v150 = vunpack.c.h.b16 %v101
    %v151 = vunpack.c.l.b16 %v102
    %v152 = vunpack.c.h.b16 %v102
    %v153 = vunpack.c.l.b16 %v103
    %v154 = vunpack.c.h.b16 %v103
    %v155 = vunpack.c.l.b16 %v104
    %v156 = vunpack.c.h.b16 %v104
    %v157 = vunpack.c.l.b16 %v105
    %v158 = vunpack.c.h.b16 %v105
    %v159 = vunpack.c.l.b16 %v106
    %v160 = vunpack.c.h.b16 %v106
    %v161 = vunpack.c.l.b16 %v107
    %v162 = vunpack.c.h.b16 %v107
    %v163 = vunpack.c.l.b16 %v108
    %v164 = vunpack.c.h.b16 %v108
    %v165 = vunpack.c.l.b16 %v109
    %v166 = vunpack.c.h.b16 %v109
    %v167 = vunpack.c.l.b16 %v110
    %v168 = vunpack.c.h.b16 %v110
    %v169 = vunpack.c.l.b16 %v111
    %v170 = vunpack.c.h.b16 %v111
    %v171 = vunpack.c.l.b16 %v112
    %v172 = vunpack.c.h.b16 %v112
    %v173 = vpack.c.b16 %v143, %v141
    %v174 = vpack.c.b16 %v144, %v142
    %v175 = vpack.c.b16 %v147, %v145
    %v176 = vpack.c.b16 %v148, %v146
    %v177 = vpack.c.b16 %v151, %v149
    %v178 = vpack.c.b16 %v152, %v150
    %v179 = vpack.c.b16 %v155, %v153
    %v180 = vpack.c.b16 %v156, %v154
    %v181 = vpack.c.b16 %v159, %v157
    %v182 = vpack.c.b16 %v160, %v158
    %v183 = vpack.c.b16 %v163, %v161
    %v184 = vpack.c.b16 %v164, %v162
    %v185 = vpack.c.b16 %v167, %v165
    %v186 = vpack.c.b16 %v168, %v166
    %v187 = vpack.c.b16 %v171, %v169
    %v188 = vpack.c.b16 %v172, %v170
    %205 = vmatprep.subr.bf16.mxu0 %v174
    %206 = vmatpush1.bf16.msra.mxu0 %v173
    %207 = vmatprep.subr.bf16.mxu0 %v176
    %208 = vmatpush1.bf16.msra.mxu0 %v175
    %209 = vmatprep.subr.bf16.mxu0 %v178
    %210 = vmatpush1.bf16.msra.mxu0 %v177
    %211 = vmatprep.subr.bf16.mxu0 %v180
    %212 = vmatpush1.bf16.msra.mxu0 %v179
    %213 = vmatprep.subr.bf16.mxu0 %v182
    %214 = vmatpush1.bf16.msra.mxu0 %v181
    %215 = vmatprep.subr.bf16.mxu0 %v184
    %216 = vmatpush1.bf16.msra.mxu0 %v183
    %217 = vmatprep.subr.bf16.mxu0 %v186
    %218 = vmatpush1.bf16.msra.mxu0 %v185
    %219 = vmatprep.subr.bf16.mxu0 %v188
    %220 = vmatpush1.bf16.msra.mxu0 %v187
    %221 = vmatprep.subr.bf16.mxu0 0
    %222 = vmatpush1.bf16.msra.mxu0 0
    %223 = vmatprep.subr.bf16.mxu0 0
    %224 = vmatpush1.bf16.msra.mxu0 0
    %225 = vmatprep.subr.bf16.mxu0 0
    %226 = vmatpush1.bf16.msra.mxu0 0
    %227 = vmatprep.subr.bf16.mxu0 0
    %228 = vmatpush1.bf16.msra.mxu0 0
    %229 = vmatprep.subr.bf16.mxu0 0
    %230 = vmatpush1.bf16.msra.mxu0 0
    %231 = vmatprep.subr.bf16.mxu0 0
    %232 = vmatpush1.bf16.msra.mxu0 0
    %233 = vmatprep.subr.bf16.mxu0 0
    %234 = vmatpush1.bf16.msra.mxu0 0
    %235 = vmatprep.subr.bf16.mxu0 0
    %236 = vmatpush1.bf16.msra.mxu0 0
    %237 = vmatprep.mubr.bf16.mxu0 0
    %238 = vmatmul.mubr.bf16.gmra.mrb[0].mxu0 %v96
    %v239 = vpop.f32.mrb[0].mxu0
    %v240 = vadd.f32 %v118, %v239
    %v241 = vpop.f32.mrb[0].mxu0
    %v242 = vadd.f32 %v122, %v241
    %v243 = vpop.f32.mrb[0].mxu0
    %v244 = vpop.f32.mrb[0].mxu0
    %245 = vdwg.mxu0
    %v246 = vmax.f32 %v240, 0.0
    %v247 = vmax.f32 %v242, 0.0
    %v248 = vpack.c.bf16 %v246, %v246
    %v249 = vpack.c.bf16 %v247, %v247
    %v250 = vld [vmem:[#allocation6] sm:$0xff]
    %v251 = vld [vmem:[#allocation6 + $0x8] sm:$0xff]
    %v252 = vld [vmem:[#allocation6 + $0x10] sm:$0xff]
    %v253 = vld [vmem:[#allocation6 + $0x18] sm:$0xff]
    %v254 = vld [vmem:[#allocation6 + $0x20] sm:$0xff]
    %v255 = vld [vmem:[#allocation6 + $0x28] sm:$0xff]
    %v256 = vld [vmem:[#allocation6 + $0x30] sm:$0xff]
    %v257 = vld [vmem:[#allocation6 + $0x38] sm:$0xff]
    %v258 = vld [vmem:[#allocation6 + $0x40] sm:$0xff]
    %v259 = vld [vmem:[#allocation6 + $0x48] sm:$0xff]
    %v260 = vld [vmem:[#allocation6 + $0x50] sm:$0xff]
    %v261 = vld [vmem:[#allocation6 + $0x58] sm:$0xff]
    %v262 = vld [vmem:[#allocation6 + $0x60] sm:$0xff]
    %v263 = vld [vmem:[#allocation6 + $0x68] sm:$0xff]
    %v264 = vld [vmem:[#allocation6 + $0x70] sm:$0xff]
    %v265 = vld [vmem:[#allocation6 + $0x78] sm:$0xff]
    %v266 = vld [vmem:[#allocation6 + $0x80] sm:$0xff]
    %v267 = vld [vmem:[#allocation6 + $0x88] sm:$0xff]
    %v268 = vld [vmem:[#allocation6 + $0x90] sm:$0xff]
    %v269 = vld [vmem:[#allocation6 + $0x98] sm:$0xff]
    %v270 = vld [vmem:[#allocation6 + $0xa0] sm:$0xff]
    %v271 = vld [vmem:[#allocation6 + $0xa8] sm:$0xff]
    %v272 = vld [vmem:[#allocation6 + $0xb0] sm:$0xff]
    %v273 = vld [vmem:[#allocation6 + $0xb8] sm:$0xff]
    %v274 = vld [vmem:[#allocation6 + $0xc0] sm:$0xff]
    %v275 = vld [vmem:[#allocation6 + $0xc8] sm:$0xff]
    %v276 = vld [vmem:[#allocation6 + $0xd0] sm:$0xff]
    %v277 = vld [vmem:[#allocation6 + $0xd8] sm:$0xff]
    %v278 = vld [vmem:[#allocation6 + $0xe0] sm:$0xff]
    %v279 = vld [vmem:[#allocation6 + $0xe8] sm:$0xff]
    %v280 = vld [vmem:[#allocation6 + $0xf0] sm:$0xff]
    %v281 = vld [vmem:[#allocation6 + $0xf8] sm:$0xff]
    %v282 = vld [vmem:[#allocation7] sm:$0x3]
    %v284 = vlaneseq
    %v285 = vshrl.u32 %v284, 7
    %v286 = vsub.s32 0, %v285
    %v287 = vrot.slane %v282, %v286
    %v288 = vlaneseq
    %v289 = vshrl.u32 %v288, 7
    %v290 = vsub.s32 1, %v289
    %v291 = vrot.slane %v282, %v290
    %v326 = vunpack.c.l.b16 %v250
    %v327 = vunpack.c.h.b16 %v250
    %v328 = vunpack.c.l.b16 %v251
    %v329 = vunpack.c.h.b16 %v251
    %v330 = vunpack.c.l.b16 %v252
    %v331 = vunpack.c.h.b16 %v252
    %v332 = vunpack.c.l.b16 %v253
    %v333 = vunpack.c.h.b16 %v253
    %v334 = vunpack.c.l.b16 %v254
    %v335 = vunpack.c.h.b16 %v254
    %v336 = vunpack.c.l.b16 %v255
    %v337 = vunpack.c.h.b16 %v255
    %v338 = vunpack.c.l.b16 %v256
    %v339 = vunpack.c.h.b16 %v256
    %v340 = vunpack.c.l.b16 %v257
    %v341 = vunpack.c.h.b16 %v257
    %v342 = vunpack.c.l.b16 %v258
    %v343 = vunpack.c.h.b16 %v258
    %v344 = vunpack.c.l.b16 %v259
    %v345 = vunpack.c.h.b16 %v259
    %v346 = vunpack.c.l.b16 %v260
    %v347 = vunpack.c.h.b16 %v260
    %v348 = vunpack.c.l.b16 %v261
    %v349 = vunpack.c.h.b16 %v261
    %v350 = vunpack.c.l.b16 %v262
    %v351 = vunpack.c.h.b16 %v262
    %v352 = vunpack.c.l.b16 %v263
    %v353 = vunpack.c.h.b16 %v263
    %v354 = vunpack.c.l.b16 %v264
    %v355 = vunpack.c.h.b16 %v264
    %v356 = vunpack.c.l.b16 %v265
    %v357 = vunpack.c.h.b16 %v265
    %v358 = vunpack.c.l.b16 %v266
    %v359 = vunpack.c.h.b16 %v266
    %v360 = vunpack.c.l.b16 %v267
    %v361 = vunpack.c.h.b16 %v267
    %v362 = vunpack.c.l.b16 %v268
    %v363 = vunpack.c.h.b16 %v268
    %v364 = vunpack.c.l.b16 %v269
    %v365 = vunpack.c.h.b16 %v269
    %v366 = vunpack.c.l.b16 %v270
    %v367 = vunpack.c.h.b16 %v270
    %v368 = vunpack.c.l.b16 %v271
    %v369 = vunpack.c.h.b16 %v271
    %v370 = vunpack.c.l.b16 %v272
    %v371 = vunpack.c.h.b16 %v272
    %v372 = vunpack.c.l.b16 %v273
    %v373 = vunpack.c.h.b16 %v273
    %v374 = vunpack.c.l.b16 %v274
    %v375 = vunpack.c.h.b16 %v274
    %v376 = vunpack.c.l.b16 %v275
    %v377 = vunpack.c.h.b16 %v275
    %v378 = vunpack.c.l.b16 %v276
    %v379 = vunpack.c.h.b16 %v276
    %v380 = vunpack.c.l.b16 %v277
    %v381 = vunpack.c.h.b16 %v277
    %v382 = vunpack.c.l.b16 %v278
    %v383 = vunpack.c.h.b16 %v278
    %v384 = vunpack.c.l.b16 %v279
    %v385 = vunpack.c.h.b16 %v279
    %v386 = vunpack.c.l.b16 %v280
    %v387 = vunpack.c.h.b16 %v280
    %v388 = vunpack.c.l.b16 %v281
    %v389 = vunpack.c.h.b16 %v281
    %v390 = vpack.c.b16 %v328, %v326
    %v391 = vpack.c.b16 %v329, %v327
    %v392 = vpack.c.b16 %v332, %v330
    %v393 = vpack.c.b16 %v333, %v331
    %v394 = vpack.c.b16 %v336, %v334
    %v395 = vpack.c.b16 %v337, %v335
    %v396 = vpack.c.b16 %v340, %v338
    %v397 = vpack.c.b16 %v341, %v339
    %v398 = vpack.c.b16 %v344, %v342
    %v399 = vpack.c.b16 %v345, %v343
    %v400 = vpack.c.b16 %v348, %v346
    %v401 = vpack.c.b16 %v349, %v347
    %v402 = vpack.c.b16 %v352, %v350
    %v403 = vpack.c.b16 %v353, %v351
    %v404 = vpack.c.b16 %v356, %v354
    %v405 = vpack.c.b16 %v357, %v355
    %v406 = vpack.c.b16 %v360, %v358
    %v407 = vpack.c.b16 %v361, %v359
    %v408 = vpack.c.b16 %v364, %v362
    %v409 = vpack.c.b16 %v365, %v363
    %v410 = vpack.c.b16 %v368, %v366
    %v411 = vpack.c.b16 %v369, %v367
    %v412 = vpack.c.b16 %v372, %v370
    %v413 = vpack.c.b16 %v373, %v371
    %v414 = vpack.c.b16 %v376, %v374
    %v415 = vpack.c.b16 %v377, %v375
    %v416 = vpack.c.b16 %v380, %v378
    %v417 = vpack.c.b16 %v381, %v379
    %v418 = vpack.c.b16 %v384, %v382
    %v419 = vpack.c.b16 %v385, %v383
    %v420 = vpack.c.b16 %v388, %v386
    %v421 = vpack.c.b16 %v389, %v387
    %454 = vmatprep.subr.bf16.mxu0 %v391
    %455 = vmatpush1.bf16.msra.mxu0 %v390
    %456 = vmatprep.subr.bf16.mxu0 %v393
    %457 = vmatpush1.bf16.msra.mxu0 %v392
    %458 = vmatprep.subr.bf16.mxu0 %v395
    %459 = vmatpush1.bf16.msra.mxu0 %v394
    %460 = vmatprep.subr.bf16.mxu0 %v397
    %461 = vmatpush1.bf16.msra.mxu0 %v396
    %462 = vmatprep.subr.bf16.mxu0 %v399
    %463 = vmatpush1.bf16.msra.mxu0 %v398
    %464 = vmatprep.subr.bf16.mxu0 %v401
    %465 = vmatpush1.bf16.msra.mxu0 %v400
    %466 = vmatprep.subr.bf16.mxu0 %v403
    %467 = vmatpush1.bf16.msra.mxu0 %v402
    %468 = vmatprep.subr.bf16.mxu0 %v405
    %469 = vmatpush1.bf16.msra.mxu0 %v404
    %470 = vmatprep.subr.bf16.mxu0 %v407
    %471 = vmatpush1.bf16.msra.mxu0 %v406
    %472 = vmatprep.subr.bf16.mxu0 %v409
    %473 = vmatpush1.bf16.msra.mxu0 %v408
    %474 = vmatprep.subr.bf16.mxu0 %v411
    %475 = vmatpush1.bf16.msra.mxu0 %v410
    %476 = vmatprep.subr.bf16.mxu0 %v413
    %477 = vmatpush1.bf16.msra.mxu0 %v412
    %478 = vmatprep.subr.bf16.mxu0 %v415
    %479 = vmatpush1.bf16.msra.mxu0 %v414
    %480 = vmatprep.subr.bf16.mxu0 %v417
    %481 = vmatpush1.bf16.msra.mxu0 %v416
    %482 = vmatprep.subr.bf16.mxu0 %v419
    %483 = vmatpush1.bf16.msra.mxu0 %v418
    %484 = vmatprep.subr.bf16.mxu0 %v421
    %485 = vmatpush1.bf16.msra.mxu0 %v420
    %486 = vmatprep.mubr.bf16.mxu0 %v249
    %487 = vmatmul.mubr.bf16.gmra.mrb[0].mxu0 %v248
    %v488 = vpop.f32.mrb[0].mxu0
    %v489 = vadd.f32 %v287, %v488
    %v490 = vpop.f32.mrb[0].mxu0
    %v491 = vadd.f32 %v291, %v490
    %v492 = vpop.f32.mrb[0].mxu0
    %v493 = vpop.f32.mrb[0].mxu0
    %494 = vdwg.mxu0
    %v495 = vmax.f32 %v489, 0.0
    %v496 = vmax.f32 %v491, 0.0
    %v497 = vpack.c.bf16 %v495, %v495
    %v498 = vpack.c.bf16 %v496, %v496
    %s499 = scalar_lea.vmem [#allocation6], 256
    %v500 = vld [vmem:[%s499] sm:$0xff]
    %v501 = vld [vmem:[%s499 + $0x8] sm:$0xff]
    %v502 = vld [vmem:[%s499 + $0x10] sm:$0xff]
    %v503 = vld [vmem:[%s499 + $0x18] sm:$0xff]
    %v504 = vld [vmem:[%s499 + $0x20] sm:$0xff]
    %v505 = vld [vmem:[%s499 + $0x28] sm:$0xff]
    %v506 = vld [vmem:[%s499 + $0x30] sm:$0xff]
    %v507 = vld [vmem:[%s499 + $0x38] sm:$0xff]
    %v508 = vld [vmem:[%s499 + $0x40] sm:$0xff]
    %v509 = vld [vmem:[%s499 + $0x48] sm:$0xff]
    %v510 = vld [vmem:[%s499 + $0x50] sm:$0xff]
    %v511 = vld [vmem:[%s499 + $0x58] sm:$0xff]
    %v512 = vld [vmem:[%s499 + $0x60] sm:$0xff]
    %v513 = vld [vmem:[%s499 + $0x68] sm:$0xff]
    %v514 = vld [vmem:[%s499 + $0x70] sm:$0xff]
    %v515 = vld [vmem:[%s499 + $0x78] sm:$0xff]
    %v516 = vld [vmem:[%s499 + $0x80] sm:$0xff]
    %v517 = vld [vmem:[%s499 + $0x88] sm:$0xff]
    %v518 = vld [vmem:[%s499 + $0x90] sm:$0xff]
    %v519 = vld [vmem:[%s499 + $0x98] sm:$0xff]
    %v520 = vld [vmem:[%s499 + $0xa0] sm:$0xff]
    %v521 = vld [vmem:[%s499 + $0xa8] sm:$0xff]
    %v522 = vld [vmem:[%s499 + $0xb0] sm:$0xff]
    %v523 = vld [vmem:[%s499 + $0xb8] sm:$0xff]
    %v524 = vld [vmem:[%s499 + $0xc0] sm:$0xff]
    %v525 = vld [vmem:[%s499 + $0xc8] sm:$0xff]
    %v526 = vld [vmem:[%s499 + $0xd0] sm:$0xff]
    %v527 = vld [vmem:[%s499 + $0xd8] sm:$0xff]
    %v528 = vld [vmem:[%s499 + $0xe0] sm:$0xff]
    %v529 = vld [vmem:[%s499 + $0xe8] sm:$0xff]
    %v530 = vld [vmem:[%s499 + $0xf0] sm:$0xff]
    %v531 = vld [vmem:[%s499 + $0xf8] sm:$0xff]
    %s532 = scalar_lea.vmem [#allocation7], 2
    %v533 = vld [vmem:[%s532] sm:$0x3]
    %v535 = vlaneseq
    %v536 = vshrl.u32 %v535, 7
    %v537 = vsub.s32 0, %v536
    %v538 = vrot.slane %v533, %v537
    %v539 = vlaneseq
    %v540 = vshrl.u32 %v539, 7
    %v541 = vsub.s32 1, %v540
    %v542 = vrot.slane %v533, %v541
    %v577 = vunpack.c.l.b16 %v500
    %v578 = vunpack.c.h.b16 %v500
    %v579 = vunpack.c.l.b16 %v501
    %v580 = vunpack.c.h.b16 %v501
    %v581 = vunpack.c.l.b16 %v502
    %v582 = vunpack.c.h.b16 %v502
    %v583 = vunpack.c.l.b16 %v503
    %v584 = vunpack.c.h.b16 %v503
    %v585 = vunpack.c.l.b16 %v504
    %v586 = vunpack.c.h.b16 %v504
    %v587 = vunpack.c.l.b16 %v505
    %v588 = vunpack.c.h.b16 %v505
    %v589 = vunpack.c.l.b16 %v506
    %v590 = vunpack.c.h.b16 %v506
    %v591 = vunpack.c.l.b16 %v507
    %v592 = vunpack.c.h.b16 %v507
    %v593 = vunpack.c.l.b16 %v508
    %v594 = vunpack.c.h.b16 %v508
    %v595 = vunpack.c.l.b16 %v509
    %v596 = vunpack.c.h.b16 %v509
    %v597 = vunpack.c.l.b16 %v510
    %v598 = vunpack.c.h.b16 %v510
    %v599 = vunpack.c.l.b16 %v511
    %v600 = vunpack.c.h.b16 %v511
    %v601 = vunpack.c.l.b16 %v512
    %v602 = vunpack.c.h.b16 %v512
    %v603 = vunpack.c.l.b16 %v513
    %v604 = vunpack.c.h.b16 %v513
    %v605 = vunpack.c.l.b16 %v514
    %v606 = vunpack.c.h.b16 %v514
    %v607 = vunpack.c.l.b16 %v515
    %v608 = vunpack.c.h.b16 %v515
    %v609 = vunpack.c.l.b16 %v516
    %v610 = vunpack.c.h.b16 %v516
    %v611 = vunpack.c.l.b16 %v517
    %v612 = vunpack.c.h.b16 %v517
    %v613 = vunpack.c.l.b16 %v518
    %v614 = vunpack.c.h.b16 %v518
    %v615 = vunpack.c.l.b16 %v519
    %v616 = vunpack.c.h.b16 %v519
    %v617 = vunpack.c.l.b16 %v520
    %v618 = vunpack.c.h.b16 %v520
    %v619 = vunpack.c.l.b16 %v521
    %v620 = vunpack.c.h.b16 %v521
    %v621 = vunpack.c.l.b16 %v522
    %v622 = vunpack.c.h.b16 %v522
    %v623 = vunpack.c.l.b16 %v523
    %v624 = vunpack.c.h.b16 %v523
    %v625 = vunpack.c.l.b16 %v524
    %v626 = vunpack.c.h.b16 %v524
    %v627 = vunpack.c.l.b16 %v525
    %v628 = vunpack.c.h.b16 %v525
    %v629 = vunpack.c.l.b16 %v526
    %v630 = vunpack.c.h.b16 %v526
    %v631 = vunpack.c.l.b16 %v527
    %v632 = vunpack.c.h.b16 %v527
    %v633 = vunpack.c.l.b16 %v528
    %v634 = vunpack.c.h.b16 %v528
    %v635 = vunpack.c.l.b16 %v529
    %v636 = vunpack.c.h.b16 %v529
    %v637 = vunpack.c.l.b16 %v530
    %v638 = vunpack.c.h.b16 %v530
    %v639 = vunpack.c.l.b16 %v531
    %v640 = vunpack.c.h.b16 %v531
    %v641 = vpack.c.b16 %v579, %v577
    %v642 = vpack.c.b16 %v580, %v578
    %v643 = vpack.c.b16 %v583, %v581
    %v644 = vpack.c.b16 %v584, %v582
    %v645 = vpack.c.b16 %v587, %v585
    %v646 = vpack.c.b16 %v588, %v586
    %v647 = vpack.c.b16 %v591, %v589
    %v648 = vpack.c.b16 %v592, %v590
    %v649 = vpack.c.b16 %v595, %v593
    %v650 = vpack.c.b16 %v596, %v594
    %v651 = vpack.c.b16 %v599, %v597
    %v652 = vpack.c.b16 %v600, %v598
    %v653 = vpack.c.b16 %v603, %v601
    %v654 = vpack.c.b16 %v604, %v602
    %v655 = vpack.c.b16 %v607, %v605
    %v656 = vpack.c.b16 %v608, %v606
    %v657 = vpack.c.b16 %v611, %v609
    %v658 = vpack.c.b16 %v612, %v610
    %v659 = vpack.c.b16 %v615, %v613
    %v660 = vpack.c.b16 %v616, %v614
    %v661 = vpack.c.b16 %v619, %v617
    %v662 = vpack.c.b16 %v620, %v618
    %v663 = vpack.c.b16 %v623, %v621
    %v664 = vpack.c.b16 %v624, %v622
    %v665 = vpack.c.b16 %v627, %v625
    %v666 = vpack.c.b16 %v628, %v626
    %v667 = vpack.c.b16 %v631, %v629
    %v668 = vpack.c.b16 %v632, %v630
    %v669 = vpack.c.b16 %v635, %v633
    %v670 = vpack.c.b16 %v636, %v634
    %v671 = vpack.c.b16 %v639, %v637
    %v672 = vpack.c.b16 %v640, %v638
    %705 = vmatprep.subr.bf16.mxu0 %v642
    %706 = vmatpush1.bf16.msra.mxu0 %v641
    %707 = vmatprep.subr.bf16.mxu0 %v644
    %708 = vmatpush1.bf16.msra.mxu0 %v643
    %709 = vmatprep.subr.bf16.mxu0 %v646
    %710 = vmatpush1.bf16.msra.mxu0 %v645
    %711 = vmatprep.subr.bf16.mxu0 %v648
    %712 = vmatpush1.bf16.msra.mxu0 %v647
    %713 = vmatprep.subr.bf16.mxu0 %v650
    %714 = vmatpush1.bf16.msra.mxu0 %v649
    %715 = vmatprep.subr.bf16.mxu0 %v652
    %716 = vmatpush1.bf16.msra.mxu0 %v651
    %717 = vmatprep.subr.bf16.mxu0 %v654
    %718 = vmatpush1.bf16.msra.mxu0 %v653
    %719 = vmatprep.subr.bf16.mxu0 %v656
    %720 = vmatpush1.bf16.msra.mxu0 %v655
    %721 = vmatprep.subr.bf16.mxu0 %v658
    %722 = vmatpush1.bf16.msra.mxu0 %v657
    %723 = vmatprep.subr.bf16.mxu0 %v660
    %724 = vmatpush1.bf16.msra.mxu0 %v659
    %725 = vmatprep.subr.bf16.mxu0 %v662
    %726 = vmatpush1.bf16.msra.mxu0 %v661
    %727 = vmatprep.subr.bf16.mxu0 %v664
    %728 = vmatpush1.bf16.msra.mxu0 %v663
    %729 = vmatprep.subr.bf16.mxu0 %v666
    %730 = vmatpush1.bf16.msra.mxu0 %v665
    %731 = vmatprep.subr.bf16.mxu0 %v668
    %732 = vmatpush1.bf16.msra.mxu0 %v667
    %733 = vmatprep.subr.bf16.mxu0 %v670
    %734 = vmatpush1.bf16.msra.mxu0 %v669
    %735 = vmatprep.subr.bf16.mxu0 %v672
    %736 = vmatpush1.bf16.msra.mxu0 %v671
    %737 = vmatprep.mubr.bf16.mxu0 %v498
    %738 = vmatmul.mubr.bf16.gmra.mrb[0].mxu0 %v497
    %v739 = vpop.f32.mrb[0].mxu0
    %v740 = vadd.f32 %v538, %v739
    %v741 = vpop.f32.mrb[0].mxu0
    %v742 = vadd.f32 %v542, %v741
    %v743 = vpop.f32.mrb[0].mxu0
    %v744 = vpop.f32.mrb[0].mxu0
    %745 = vdwg.mxu0
    %v746 = vmax.f32 %v740, 0.0
    %v747 = vmax.f32 %v742, 0.0
    %v748 = vadd.f32 %v246, %v746
    %v749 = vadd.f32 %v247, %v747
    %v750 = vpack.c.bf16 %v748, %v748
    %v751 = vpack.c.bf16 %v749, %v749
    %s752 = scalar_lea.vmem [#allocation6], 512
    %v753 = vld [vmem:[%s752] sm:$0xff]
    %v754 = vld [vmem:[%s752 + $0x8] sm:$0xff]
    %v755 = vld [vmem:[%s752 + $0x10] sm:$0xff]
    %v756 = vld [vmem:[%s752 + $0x18] sm:$0xff]
    %v757 = vld [vmem:[%s752 + $0x20] sm:$0xff]
    %v758 = vld [vmem:[%s752 + $0x28] sm:$0xff]
    %v759 = vld [vmem:[%s752 + $0x30] sm:$0xff]
    %v760 = vld [vmem:[%s752 + $0x38] sm:$0xff]
    %v761 = vld [vmem:[%s752 + $0x40] sm:$0xff]
    %v762 = vld [vmem:[%s752 + $0x48] sm:$0xff]
    %v763 = vld [vmem:[%s752 + $0x50] sm:$0xff]
    %v764 = vld [vmem:[%s752 + $0x58] sm:$0xff]
    %v765 = vld [vmem:[%s752 + $0x60] sm:$0xff]
    %v766 = vld [vmem:[%s752 + $0x68] sm:$0xff]
    %v767 = vld [vmem:[%s752 + $0x70] sm:$0xff]
    %v768 = vld [vmem:[%s752 + $0x78] sm:$0xff]
    %v769 = vld [vmem:[%s752 + $0x80] sm:$0xff]
    %v770 = vld [vmem:[%s752 + $0x88] sm:$0xff]
    %v771 = vld [vmem:[%s752 + $0x90] sm:$0xff]
    %v772 = vld [vmem:[%s752 + $0x98] sm:$0xff]
    %v773 = vld [vmem:[%s752 + $0xa0] sm:$0xff]
    %v774 = vld [vmem:[%s752 + $0xa8] sm:$0xff]
    %v775 = vld [vmem:[%s752 + $0xb0] sm:$0xff]
    %v776 = vld [vmem:[%s752 + $0xb8] sm:$0xff]
    %v777 = vld [vmem:[%s752 + $0xc0] sm:$0xff]
    %v778 = vld [vmem:[%s752 + $0xc8] sm:$0xff]
    %v779 = vld [vmem:[%s752 + $0xd0] sm:$0xff]
    %v780 = vld [vmem:[%s752 + $0xd8] sm:$0xff]
    %v781 = vld [vmem:[%s752 + $0xe0] sm:$0xff]
    %v782 = vld [vmem:[%s752 + $0xe8] sm:$0xff]
    %v783 = vld [vmem:[%s752 + $0xf0] sm:$0xff]
    %v784 = vld [vmem:[%s752 + $0xf8] sm:$0xff]
    %s785 = scalar_lea.vmem [#allocation7], 4
    %v786 = vld [vmem:[%s785] sm:$0x3]
    %v788 = vlaneseq
    %v789 = vshrl.u32 %v788, 7
    %v790 = vsub.s32 0, %v789
    %v791 = vrot.slane %v786, %v790
    %v792 = vlaneseq
    %v793 = vshrl.u32 %v792, 7
    %v794 = vsub.s32 1, %v793
    %v795 = vrot.slane %v786, %v794
    %v830 = vunpack.c.l.b16 %v753
    %v831 = vunpack.c.h.b16 %v753
    %v832 = vunpack.c.l.b16 %v754
    %v833 = vunpack.c.h.b16 %v754
    %v834 = vunpack.c.l.b16 %v755
    %v835 = vunpack.c.h.b16 %v755
    %v836 = vunpack.c.l.b16 %v756
    %v837 = vunpack.c.h.b16 %v756
    %v838 = vunpack.c.l.b16 %v757
    %v839 = vunpack.c.h.b16 %v757
    %v840 = vunpack.c.l.b16 %v758
    %v841 = vunpack.c.h.b16 %v758
    %v842 = vunpack.c.l.b16 %v759
    %v843 = vunpack.c.h.b16 %v759
    %v844 = vunpack.c.l.b16 %v760
    %v845 = vunpack.c.h.b16 %v760
    %v846 = vunpack.c.l.b16 %v761
    %v847 = vunpack.c.h.b16 %v761
    %v848 = vunpack.c.l.b16 %v762
    %v849 = vunpack.c.h.b16 %v762
    %v850 = vunpack.c.l.b16 %v763
    %v851 = vunpack.c.h.b16 %v763
    %v852 = vunpack.c.l.b16 %v764
    %v853 = vunpack.c.h.b16 %v764
    %v854 = vunpack.c.l.b16 %v765
    %v855 = vunpack.c.h.b16 %v765
    %v856 = vunpack.c.l.b16 %v766
    %v857 = vunpack.c.h.b16 %v766
    %v858 = vunpack.c.l.b16 %v767
    %v859 = vunpack.c.h.b16 %v767
    %v860 = vunpack.c.l.b16 %v768
    %v861 = vunpack.c.h.b16 %v768
    %v862 = vunpack.c.l.b16 %v769
    %v863 = vunpack.c.h.b16 %v769
    %v864 = vunpack.c.l.b16 %v770
    %v865 = vunpack.c.h.b16 %v770
    %v866 = vunpack.c.l.b16 %v771
    %v867 = vunpack.c.h.b16 %v771
    %v868 = vunpack.c.l.b16 %v772
    %v869 = vunpack.c.h.b16 %v772
    %v870 = vunpack.c.l.b16 %v773
    %v871 = vunpack.c.h.b16 %v773
    %v872 = vunpack.c.l.b16 %v774
    %v873 = vunpack.c.h.b16 %v774
    %v874 = vunpack.c.l.b16 %v775
    %v875 = vunpack.c.h.b16 %v775
    %v876 = vunpack.c.l.b16 %v776
    %v877 = vunpack.c.h.b16 %v776
    %v878 = vunpack.c.l.b16 %v777
    %v879 = vunpack.c.h.b16 %v777
    %v880 = vunpack.c.l.b16 %v778
    %v881 = vunpack.c.h.b16 %v778
    %v882 = vunpack.c.l.b16 %v779
    %v883 = vunpack.c.h.b16 %v779
    %v884 = vunpack.c.l.b16 %v780
    %v885 = vunpack.c.h.b16 %v780
    %v886 = vunpack.c.l.b16 %v781
    %v887 = vunpack.c.h.b16 %v781
    %v888 = vunpack.c.l.b16 %v782
    %v889 = vunpack.c.h.b16 %v782
    %v890 = vunpack.c.l.b16 %v783
    %v891 = vunpack.c.h.b16 %v783
    %v892 = vunpack.c.l.b16 %v784
    %v893 = vunpack.c.h.b16 %v784
    %v894 = vpack.c.b16 %v832, %v830
    %v895 = vpack.c.b16 %v833, %v831
    %v896 = vpack.c.b16 %v836, %v834
    %v897 = vpack.c.b16 %v837, %v835
    %v898 = vpack.c.b16 %v840, %v838
    %v899 = vpack.c.b16 %v841, %v839
    %v900 = vpack.c.b16 %v844, %v842
    %v901 = vpack.c.b16 %v845, %v843
    %v902 = vpack.c.b16 %v848, %v846
    %v903 = vpack.c.b16 %v849, %v847
    %v904 = vpack.c.b16 %v852, %v850
    %v905 = vpack.c.b16 %v853, %v851
    %v906 = vpack.c.b16 %v856, %v854
    %v907 = vpack.c.b16 %v857, %v855
    %v908 = vpack.c.b16 %v860, %v858
    %v909 = vpack.c.b16 %v861, %v859
    %v910 = vpack.c.b16 %v864, %v862
    %v911 = vpack.c.b16 %v865, %v863
    %v912 = vpack.c.b16 %v868, %v866
    %v913 = vpack.c.b16 %v869, %v867
    %v914 = vpack.c.b16 %v872, %v870
    %v915 = vpack.c.b16 %v873, %v871
    %v916 = vpack.c.b16 %v876, %v874
    %v917 = vpack.c.b16 %v877, %v875
    %v918 = vpack.c.b16 %v880, %v878
    %v919 = vpack.c.b16 %v881, %v879
    %v920 = vpack.c.b16 %v884, %v882
    %v921 = vpack.c.b16 %v885, %v883
    %v922 = vpack.c.b16 %v888, %v886
    %v923 = vpack.c.b16 %v889, %v887
    %v924 = vpack.c.b16 %v892, %v890
    %v925 = vpack.c.b16 %v893, %v891
    %958 = vmatprep.subr.bf16.mxu0 %v895
    %959 = vmatpush1.bf16.msra.mxu0 %v894
    %960 = vmatprep.subr.bf16.mxu0 %v897
    %961 = vmatpush1.bf16.msra.mxu0 %v896
    %962 = vmatprep.subr.bf16.mxu0 %v899
    %963 = vmatpush1.bf16.msra.mxu0 %v898
    %964 = vmatprep.subr.bf16.mxu0 %v901
    %965 = vmatpush1.bf16.msra.mxu0 %v900
    %966 = vmatprep.subr.bf16.mxu0 %v903
    %967 = vmatpush1.bf16.msra.mxu0 %v902
    %968 = vmatprep.subr.bf16.mxu0 %v905
    %969 = vmatpush1.bf16.msra.mxu0 %v904
    %970 = vmatprep.subr.bf16.mxu0 %v907
    %971 = vmatpush1.bf16.msra.mxu0 %v906
    %972 = vmatprep.subr.bf16.mxu0 %v909
    %973 = vmatpush1.bf16.msra.mxu0 %v908
    %974 = vmatprep.subr.bf16.mxu0 %v911
    %975 = vmatpush1.bf16.msra.mxu0 %v910
    %976 = vmatprep.subr.bf16.mxu0 %v913
    %977 = vmatpush1.bf16.msra.mxu0 %v912
    %978 = vmatprep.subr.bf16.mxu0 %v915
    %979 = vmatpush1.bf16.msra.mxu0 %v914
    %980 = vmatprep.subr.bf16.mxu0 %v917
    %981 = vmatpush1.bf16.msra.mxu0 %v916
    %982 = vmatprep.subr.bf16.mxu0 %v919
    %983 = vmatpush1.bf16.msra.mxu0 %v918
    %984 = vmatprep.subr.bf16.mxu0 %v921
    %985 = vmatpush1.bf16.msra.mxu0 %v920
    %986 = vmatprep.subr.bf16.mxu0 %v923
    %987 = vmatpush1.bf16.msra.mxu0 %v922
    %988 = vmatprep.subr.bf16.mxu0 %v925
    %989 = vmatpush1.bf16.msra.mxu0 %v924
    %990 = vmatprep.mubr.bf16.mxu0 %v751
    %991 = vmatmul.mubr.bf16.gmra.mrb[0].mxu0 %v750
    %v992 = vpop.f32.mrb[0].mxu0
    %v993 = vadd.f32 %v791, %v992
    %v994 = vpop.f32.mrb[0].mxu0
    %v995 = vadd.f32 %v795, %v994
    %v996 = vpop.f32.mrb[0].mxu0
    %v997 = vpop.f32.mrb[0].mxu0
    %998 = vdwg.mxu0
    %v999 = vmax.f32 %v993, 0.0
    %v1000 = vmax.f32 %v995, 0.0
    %v1001 = vpack.c.bf16 %v999, %v999
    %v1002 = vpack.c.bf16 %v1000, %v1000
    %s1003 = scalar_lea.vmem [#allocation6], 768
    %v1004 = vld [vmem:[%s1003] sm:$0xff]
    %v1005 = vld [vmem:[%s1003 + $0x8] sm:$0xff]
    %v1006 = vld [vmem:[%s1003 + $0x10] sm:$0xff]
    %v1007 = vld [vmem:[%s1003 + $0x18] sm:$0xff]
    %v1008 = vld [vmem:[%s1003 + $0x20] sm:$0xff]
    %v1009 = vld [vmem:[%s1003 + $0x28] sm:$0xff]
    %v1010 = vld [vmem:[%s1003 + $0x30] sm:$0xff]
    %v1011 = vld [vmem:[%s1003 + $0x38] sm:$0xff]
    %v1012 = vld [vmem:[%s1003 + $0x40] sm:$0xff]
    %v1013 = vld [vmem:[%s1003 + $0x48] sm:$0xff]
    %v1014 = vld [vmem:[%s1003 + $0x50] sm:$0xff]
    %v1015 = vld [vmem:[%s1003 + $0x58] sm:$0xff]
    %v1016 = vld [vmem:[%s1003 + $0x60] sm:$0xff]
    %v1017 = vld [vmem:[%s1003 + $0x68] sm:$0xff]
    %v1018 = vld [vmem:[%s1003 + $0x70] sm:$0xff]
    %v1019 = vld [vmem:[%s1003 + $0x78] sm:$0xff]
    %v1020 = vld [vmem:[%s1003 + $0x80] sm:$0xff]
    %v1021 = vld [vmem:[%s1003 + $0x88] sm:$0xff]
    %v1022 = vld [vmem:[%s1003 + $0x90] sm:$0xff]
    %v1023 = vld [vmem:[%s1003 + $0x98] sm:$0xff]
    %v1024 = vld [vmem:[%s1003 + $0xa0] sm:$0xff]
    %v1025 = vld [vmem:[%s1003 + $0xa8] sm:$0xff]
    %v1026 = vld [vmem:[%s1003 + $0xb0] sm:$0xff]
    %v1027 = vld [vmem:[%s1003 + $0xb8] sm:$0xff]
    %v1028 = vld [vmem:[%s1003 + $0xc0] sm:$0xff]
    %v1029 = vld [vmem:[%s1003 + $0xc8] sm:$0xff]
    %v1030 = vld [vmem:[%s1003 + $0xd0] sm:$0xff]
    %v1031 = vld [vmem:[%s1003 + $0xd8] sm:$0xff]
    %v1032 = vld [vmem:[%s1003 + $0xe0] sm:$0xff]
    %v1033 = vld [vmem:[%s1003 + $0xe8] sm:$0xff]
    %v1034 = vld [vmem:[%s1003 + $0xf0] sm:$0xff]
    %v1035 = vld [vmem:[%s1003 + $0xf8] sm:$0xff]
    %s1036 = scalar_lea.vmem [#allocation7], 6
    %v1037 = vld [vmem:[%s1036] sm:$0x3]
    %v1039 = vlaneseq
    %v1040 = vshrl.u32 %v1039, 7
    %v1041 = vsub.s32 0, %v1040
    %v1042 = vrot.slane %v1037, %v1041
    %v1043 = vlaneseq
    %v1044 = vshrl.u32 %v1043, 7
    %v1045 = vsub.s32 1, %v1044
    %v1046 = vrot.slane %v1037, %v1045
    %v1081 = vunpack.c.l.b16 %v1004
    %v1082 = vunpack.c.h.b16 %v1004
    %v1083 = vunpack.c.l.b16 %v1005
    %v1084 = vunpack.c.h.b16 %v1005
    %v1085 = vunpack.c.l.b16 %v1006
    %v1086 = vunpack.c.h.b16 %v1006
    %v1087 = vunpack.c.l.b16 %v1007
    %v1088 = vunpack.c.h.b16 %v1007
    %v1089 = vunpack.c.l.b16 %v1008
    %v1090 = vunpack.c.h.b16 %v1008
    %v1091 = vunpack.c.l.b16 %v1009
    %v1092 = vunpack.c.h.b16 %v1009
    %v1093 = vunpack.c.l.b16 %v1010
    %v1094 = vunpack.c.h.b16 %v1010
    %v1095 = vunpack.c.l.b16 %v1011
    %v1096 = vunpack.c.h.b16 %v1011
    %v1097 = vunpack.c.l.b16 %v1012
    %v1098 = vunpack.c.h.b16 %v1012
    %v1099 = vunpack.c.l.b16 %v1013
    %v1100 = vunpack.c.h.b16 %v1013
    %v1101 = vunpack.c.l.b16 %v1014
    %v1102 = vunpack.c.h.b16 %v1014
    %v1103 = vunpack.c.l.b16 %v1015
    %v1104 = vunpack.c.h.b16 %v1015
    %v1105 = vunpack.c.l.b16 %v1016
    %v1106 = vunpack.c.h.b16 %v1016
    %v1107 = vunpack.c.l.b16 %v1017
    %v1108 = vunpack.c.h.b16 %v1017
    %v1109 = vunpack.c.l.b16 %v1018
    %v1110 = vunpack.c.h.b16 %v1018
    %v1111 = vunpack.c.l.b16 %v1019
    %v1112 = vunpack.c.h.b16 %v1019
    %v1113 = vunpack.c.l.b16 %v1020
    %v1114 = vunpack.c.h.b16 %v1020
    %v1115 = vunpack.c.l.b16 %v1021
    %v1116 = vunpack.c.h.b16 %v1021
    %v1117 = vunpack.c.l.b16 %v1022
    %v1118 = vunpack.c.h.b16 %v1022
    %v1119 = vunpack.c.l.b16 %v1023
    %v1120 = vunpack.c.h.b16 %v1023
    %v1121 = vunpack.c.l.b16 %v1024
    %v1122 = vunpack.c.h.b16 %v1024
    %v1123 = vunpack.c.l.b16 %v1025
    %v1124 = vunpack.c.h.b16 %v1025
    %v1125 = vunpack.c.l.b16 %v1026
    %v1126 = vunpack.c.h.b16 %v1026
    %v1127 = vunpack.c.l.b16 %v1027
    %v1128 = vunpack.c.h.b16 %v1027
    %v1129 = vunpack.c.l.b16 %v1028
    %v1130 = vunpack.c.h.b16 %v1028
    %v1131 = vunpack.c.l.b16 %v1029
    %v1132 = vunpack.c.h.b16 %v1029
    %v1133 = vunpack.c.l.b16 %v1030
    %v1134 = vunpack.c.h.b16 %v1030
    %v1135 = vunpack.c.l.b16 %v1031
    %v1136 = vunpack.c.h.b16 %v1031
    %v1137 = vunpack.c.l.b16 %v1032
    %v1138 = vunpack.c.h.b16 %v1032
    %v1139 = vunpack.c.l.b16 %v1033
    %v1140 = vunpack.c.h.b16 %v1033
    %v1141 = vunpack.c.l.b16 %v1034
    %v1142 = vunpack.c.h.b16 %v1034
    %v1143 = vunpack.c.l.b16 %v1035
    %v1144 = vunpack.c.h.b16 %v1035
    %v1145 = vpack.c.b16 %v1083, %v1081
    %v1146 = vpack.c.b16 %v1084, %v1082
    %v1147 = vpack.c.b16 %v1087, %v1085
    %v1148 = vpack.c.b16 %v1088, %v1086
    %v1149 = vpack.c.b16 %v1091, %v1089
    %v1150 = vpack.c.b16 %v1092, %v1090
    %v1151 = vpack.c.b16 %v1095, %v1093
    %v1152 = vpack.c.b16 %v1096, %v1094
    %v1153 = vpack.c.b16 %v1099, %v1097
    %v1154 = vpack.c.b16 %v1100, %v1098
    %v1155 = vpack.c.b16 %v1103, %v1101
    %v1156 = vpack.c.b16 %v1104, %v1102
    %v1157 = vpack.c.b16 %v1107, %v1105
    %v1158 = vpack.c.b16 %v1108, %v1106
    %v1159 = vpack.c.b16 %v1111, %v1109
    %v1160 = vpack.c.b16 %v1112, %v1110
    %v1161 = vpack.c.b16 %v1115, %v1113
    %v1162 = vpack.c.b16 %v1116, %v1114
    %v1163 = vpack.c.b16 %v1119, %v1117
    %v1164 = vpack.c.b16 %v1120, %v1118
    %v1165 = vpack.c.b16 %v1123, %v1121
    %v1166 = vpack.c.b16 %v1124, %v1122
    %v1167 = vpack.c.b16 %v1127, %v1125
    %v1168 = vpack.c.b16 %v1128, %v1126
    %v1169 = vpack.c.b16 %v1131, %v1129
    %v1170 = vpack.c.b16 %v1132, %v1130
    %v1171 = vpack.c.b16 %v1135, %v1133
    %v1172 = vpack.c.b16 %v1136, %v1134
    %v1173 = vpack.c.b16 %v1139, %v1137
    %v1174 = vpack.c.b16 %v1140, %v1138
    %v1175 = vpack.c.b16 %v1143, %v1141
    %v1176 = vpack.c.b16 %v1144, %v1142
    %1209 = vmatprep.subr.bf16.mxu0 %v1146
    %1210 = vmatpush1.bf16.msra.mxu0 %v1145
    %1211 = vmatprep.subr.bf16.mxu0 %v1148
    %1212 = vmatpush1.bf16.msra.mxu0 %v1147
    %1213 = vmatprep.subr.bf16.mxu0 %v1150
    %1214 = vmatpush1.bf16.msra.mxu0 %v1149
    %1215 = vmatprep.subr.bf16.mxu0 %v1152
    %1216 = vmatpush1.bf16.msra.mxu0 %v1151
    %1217 = vmatprep.subr.bf16.mxu0 %v1154
    %1218 = vmatpush1.bf16.msra.mxu0 %v1153
    %1219 = vmatprep.subr.bf16.mxu0 %v1156
    %1220 = vmatpush1.bf16.msra.mxu0 %v1155
    %1221 = vmatprep.subr.bf16.mxu0 %v1158
    %1222 = vmatpush1.bf16.msra.mxu0 %v1157
    %1223 = vmatprep.subr.bf16.mxu0 %v1160
    %1224 = vmatpush1.bf16.msra.mxu0 %v1159
    %1225 = vmatprep.subr.bf16.mxu0 %v1162
    %1226 = vmatpush1.bf16.msra.mxu0 %v1161
    %1227 = vmatprep.subr.bf16.mxu0 %v1164
    %1228 = vmatpush1.bf16.msra.mxu0 %v1163
    %1229 = vmatprep.subr.bf16.mxu0 %v1166
    %1230 = vmatpush1.bf16.msra.mxu0 %v1165
    %1231 = vmatprep.subr.bf16.mxu0 %v1168
    %1232 = vmatpush1.bf16.msra.mxu0 %v1167
    %1233 = vmatprep.subr.bf16.mxu0 %v1170
    %1234 = vmatpush1.bf16.msra.mxu0 %v1169
    %1235 = vmatprep.subr.bf16.mxu0 %v1172
    %1236 = vmatpush1.bf16.msra.mxu0 %v1171
    %1237 = vmatprep.subr.bf16.mxu0 %v1174
    %1238 = vmatpush1.bf16.msra.mxu0 %v1173
    %1239 = vmatprep.subr.bf16.mxu0 %v1176
    %1240 = vmatpush1.bf16.msra.mxu0 %v1175
    %1241 = vmatprep.mubr.bf16.mxu0 %v1002
    %1242 = vmatmul.mubr.bf16.gmra.mrb[0].mxu0 %v1001
    %v1243 = vpop.f32.mrb[0].mxu0
    %v1244 = vadd.f32 %v1042, %v1243
    %v1245 = vpop.f32.mrb[0].mxu0
    %v1246 = vadd.f32 %v1046, %v1245
    %v1247 = vpop.f32.mrb[0].mxu0
    %v1248 = vpop.f32.mrb[0].mxu0
    %1249 = vdwg.mxu0
    %v1250 = vmax.f32 %v1244, 0.0
    %v1251 = vmax.f32 %v1246, 0.0
    %v1252 = vadd.f32 %v748, %v1250
    %v1253 = vadd.f32 %v749, %v1251
    %v1254 = vpack.c.bf16 %v1252, %v1252
    %v1255 = vpack.c.bf16 %v1253, %v1253
    %s1256 = scalar_lea.vmem [#allocation6], 1024
    %v1257 = vld [vmem:[%s1256] sm:$0xff]
    %v1258 = vld [vmem:[%s1256 + $0x8] sm:$0xff]
    %v1259 = vld [vmem:[%s1256 + $0x10] sm:$0xff]
    %v1260 = vld [vmem:[%s1256 + $0x18] sm:$0xff]
    %v1261 = vld [vmem:[%s1256 + $0x20] sm:$0xff]
    %v1262 = vld [vmem:[%s1256 + $0x28] sm:$0xff]
    %v1263 = vld [vmem:[%s1256 + $0x30] sm:$0xff]
    %v1264 = vld [vmem:[%s1256 + $0x38] sm:$0xff]
    %v1265 = vld [vmem:[%s1256 + $0x40] sm:$0xff]
    %v1266 = vld [vmem:[%s1256 + $0x48] sm:$0xff]
    %v1267 = vld [vmem:[%s1256 + $0x50] sm:$0xff]
    %v1268 = vld [vmem:[%s1256 + $0x58] sm:$0xff]
    %v1269 = vld [vmem:[%s1256 + $0x60] sm:$0xff]
    %v1270 = vld [vmem:[%s1256 + $0x68] sm:$0xff]
    %v1271 = vld [vmem:[%s1256 + $0x70] sm:$0xff]
    %v1272 = vld [vmem:[%s1256 + $0x78] sm:$0xff]
    %v1273 = vld [vmem:[%s1256 + $0x80] sm:$0xff]
    %v1274 = vld [vmem:[%s1256 + $0x88] sm:$0xff]
    %v1275 = vld [vmem:[%s1256 + $0x90] sm:$0xff]
    %v1276 = vld [vmem:[%s1256 + $0x98] sm:$0xff]
    %v1277 = vld [vmem:[%s1256 + $0xa0] sm:$0xff]
    %v1278 = vld [vmem:[%s1256 + $0xa8] sm:$0xff]
    %v1279 = vld [vmem:[%s1256 + $0xb0] sm:$0xff]
    %v1280 = vld [vmem:[%s1256 + $0xb8] sm:$0xff]
    %v1281 = vld [vmem:[%s1256 + $0xc0] sm:$0xff]
    %v1282 = vld [vmem:[%s1256 + $0xc8] sm:$0xff]
    %v1283 = vld [vmem:[%s1256 + $0xd0] sm:$0xff]
    %v1284 = vld [vmem:[%s1256 + $0xd8] sm:$0xff]
    %v1285 = vld [vmem:[%s1256 + $0xe0] sm:$0xff]
    %v1286 = vld [vmem:[%s1256 + $0xe8] sm:$0xff]
    %v1287 = vld [vmem:[%s1256 + $0xf0] sm:$0xff]
    %v1288 = vld [vmem:[%s1256 + $0xf8] sm:$0xff]
    %s1289 = scalar_lea.vmem [#allocation7], 8
    %v1290 = vld [vmem:[%s1289] sm:$0x3]
    %v1292 = vlaneseq
    %v1293 = vshrl.u32 %v1292, 7
    %v1294 = vsub.s32 0, %v1293
    %v1295 = vrot.slane %v1290, %v1294
    %v1296 = vlaneseq
    %v1297 = vshrl.u32 %v1296, 7
    %v1298 = vsub.s32 1, %v1297
    %v1299 = vrot.slane %v1290, %v1298
    %v1334 = vunpack.c.l.b16 %v1257
    %v1335 = vunpack.c.h.b16 %v1257
    %v1336 = vunpack.c.l.b16 %v1258
    %v1337 = vunpack.c.h.b16 %v1258
    %v1338 = vunpack.c.l.b16 %v1259
    %v1339 = vunpack.c.h.b16 %v1259
    %v1340 = vunpack.c.l.b16 %v1260
    %v1341 = vunpack.c.h.b16 %v1260
    %v1342 = vunpack.c.l.b16 %v1261
    %v1343 = vunpack.c.h.b16 %v1261
    %v1344 = vunpack.c.l.b16 %v1262
    %v1345 = vunpack.c.h.b16 %v1262
    %v1346 = vunpack.c.l.b16 %v1263
    %v1347 = vunpack.c.h.b16 %v1263
    %v1348 = vunpack.c.l.b16 %v1264
    %v1349 = vunpack.c.h.b16 %v1264
    %v1350 = vunpack.c.l.b16 %v1265
    %v1351 = vunpack.c.h.b16 %v1265
    %v1352 = vunpack.c.l.b16 %v1266
    %v1353 = vunpack.c.h.b16 %v1266
    %v1354 = vunpack.c.l.b16 %v1267
    %v1355 = vunpack.c.h.b16 %v1267
    %v1356 = vunpack.c.l.b16 %v1268
    %v1357 = vunpack.c.h.b16 %v1268
    %v1358 = vunpack.c.l.b16 %v1269
    %v1359 = vunpack.c.h.b16 %v1269
    %v1360 = vunpack.c.l.b16 %v1270
    %v1361 = vunpack.c.h.b16 %v1270
    %v1362 = vunpack.c.l.b16 %v1271
    %v1363 = vunpack.c.h.b16 %v1271
    %v1364 = vunpack.c.l.b16 %v1272
    %v1365 = vunpack.c.h.b16 %v1272
    %v1366 = vunpack.c.l.b16 %v1273
    %v1367 = vunpack.c.h.b16 %v1273
    %v1368 = vunpack.c.l.b16 %v1274
    %v1369 = vunpack.c.h.b16 %v1274
    %v1370 = vunpack.c.l.b16 %v1275
    %v1371 = vunpack.c.h.b16 %v1275
    %v1372 = vunpack.c.l.b16 %v1276
    %v1373 = vunpack.c.h.b16 %v1276
    %v1374 = vunpack.c.l.b16 %v1277
    %v1375 = vunpack.c.h.b16 %v1277
    %v1376 = vunpack.c.l.b16 %v1278
    %v1377 = vunpack.c.h.b16 %v1278
    %v1378 = vunpack.c.l.b16 %v1279
    %v1379 = vunpack.c.h.b16 %v1279
    %v1380 = vunpack.c.l.b16 %v1280
    %v1381 = vunpack.c.h.b16 %v1280
    %v1382 = vunpack.c.l.b16 %v1281
    %v1383 = vunpack.c.h.b16 %v1281
    %v1384 = vunpack.c.l.b16 %v1282
    %v1385 = vunpack.c.h.b16 %v1282
    %v1386 = vunpack.c.l.b16 %v1283
    %v1387 = vunpack.c.h.b16 %v1283
    %v1388 = vunpack.c.l.b16 %v1284
    %v1389 = vunpack.c.h.b16 %v1284
    %v1390 = vunpack.c.l.b16 %v1285
    %v1391 = vunpack.c.h.b16 %v1285
    %v1392 = vunpack.c.l.b16 %v1286
    %v1393 = vunpack.c.h.b16 %v1286
    %v1394 = vunpack.c.l.b16 %v1287
    %v1395 = vunpack.c.h.b16 %v1287
    %v1396 = vunpack.c.l.b16 %v1288
    %v1397 = vunpack.c.h.b16 %v1288
    %v1398 = vpack.c.b16 %v1336, %v1334
    %v1399 = vpack.c.b16 %v1337, %v1335
    %v1400 = vpack.c.b16 %v1340, %v1338
    %v1401 = vpack.c.b16 %v1341, %v1339
    %v1402 = vpack.c.b16 %v1344, %v1342
    %v1403 = vpack.c.b16 %v1345, %v1343
    %v1404 = vpack.c.b16 %v1348, %v1346
    %v1405 = vpack.c.b16 %v1349, %v1347
    %v1406 = vpack.c.b16 %v1352, %v1350
    %v1407 = vpack.c.b16 %v1353, %v1351
    %v1408 = vpack.c.b16 %v1356, %v1354
    %v1409 = vpack.c.b16 %v1357, %v1355
    %v1410 = vpack.c.b16 %v1360, %v1358
    %v1411 = vpack.c.b16 %v1361, %v1359
    %v1412 = vpack.c.b16 %v1364, %v1362
    %v1413 = vpack.c.b16 %v1365, %v1363
    %v1414 = vpack.c.b16 %v1368, %v1366
    %v1415 = vpack.c.b16 %v1369, %v1367
    %v1416 = vpack.c.b16 %v1372, %v1370
    %v1417 = vpack.c.b16 %v1373, %v1371
    %v1418 = vpack.c.b16 %v1376, %v1374
    %v1419 = vpack.c.b16 %v1377, %v1375
    %v1420 = vpack.c.b16 %v1380, %v1378
    %v1421 = vpack.c.b16 %v1381, %v1379
    %v1422 = vpack.c.b16 %v1384, %v1382
    %v1423 = vpack.c.b16 %v1385, %v1383
    %v1424 = vpack.c.b16 %v1388, %v1386
    %v1425 = vpack.c.b16 %v1389, %v1387
    %v1426 = vpack.c.b16 %v1392, %v1390
    %v1427 = vpack.c.b16 %v1393, %v1391
    %v1428 = vpack.c.b16 %v1396, %v1394
    %v1429 = vpack.c.b16 %v1397, %v1395
    %1462 = vmatprep.subr.bf16.mxu0 %v1399
    %1463 = vmatpush1.bf16.msra.mxu0 %v1398
    %1464 = vmatprep.subr.bf16.mxu0 %v1401
    %1465 = vmatpush1.bf16.msra.mxu0 %v1400
    %1466 = vmatprep.subr.bf16.mxu0 %v1403
    %1467 = vmatpush1.bf16.msra.mxu0 %v1402
    %1468 = vmatprep.subr.bf16.mxu0 %v1405
    %1469 = vmatpush1.bf16.msra.mxu0 %v1404
    %1470 = vmatprep.subr.bf16.mxu0 %v1407
    %1471 = vmatpush1.bf16.msra.mxu0 %v1406
    %1472 = vmatprep.subr.bf16.mxu0 %v1409
    %1473 = vmatpush1.bf16.msra.mxu0 %v1408
    %1474 = vmatprep.subr.bf16.mxu0 %v1411
    %1475 = vmatpush1.bf16.msra.mxu0 %v1410
    %1476 = vmatprep.subr.bf16.mxu0 %v1413
    %1477 = vmatpush1.bf16.msra.mxu0 %v1412
    %1478 = vmatprep.subr.bf16.mxu0 %v1415
    %1479 = vmatpush1.bf16.msra.mxu0 %v1414
    %1480 = vmatprep.subr.bf16.mxu0 %v1417
    %1481 = vmatpush1.bf16.msra.mxu0 %v1416
    %1482 = vmatprep.subr.bf16.mxu0 %v1419
    %1483 = vmatpush1.bf16.msra.mxu0 %v1418
    %1484 = vmatprep.subr.bf16.mxu0 %v1421
    %1485 = vmatpush1.bf16.msra.mxu0 %v1420
    %1486 = vmatprep.subr.bf16.mxu0 %v1423
    %1487 = vmatpush1.bf16.msra.mxu0 %v1422
    %1488 = vmatprep.subr.bf16.mxu0 %v1425
    %1489 = vmatpush1.bf16.msra.mxu0 %v1424
    %1490 = vmatprep.subr.bf16.mxu0 %v1427
    %1491 = vmatpush1.bf16.msra.mxu0 %v1426
    %1492 = vmatprep.subr.bf16.mxu0 %v1429
    %1493 = vmatpush1.bf16.msra.mxu0 %v1428
    %1494 = vmatprep.mubr.bf16.mxu0 %v1255
    %1495 = vmatmul.mubr.bf16.gmra.mrb[0].mxu0 %v1254
    %v1496 = vpop.f32.mrb[0].mxu0
    %v1497 = vadd.f32 %v1295, %v1496
    %v1498 = vpop.f32.mrb[0].mxu0
    %v1499 = vadd.f32 %v1299, %v1498
    %v1500 = vpop.f32.mrb[0].mxu0
    %v1501 = vpop.f32.mrb[0].mxu0
    %1502 = vdwg.mxu0
    %v1503 = vmax.f32 %v1497, 0.0
    %v1504 = vmax.f32 %v1499, 0.0
    %v1505 = vpack.c.bf16 %v1503, %v1503
    %v1506 = vpack.c.bf16 %v1504, %v1504
    %s1507 = scalar_lea.vmem [#allocation6], 1280
    %v1508 = vld [vmem:[%s1507] sm:$0xff]
    %v1509 = vld [vmem:[%s1507 + $0x8] sm:$0xff]
    %v1510 = vld [vmem:[%s1507 + $0x10] sm:$0xff]
    %v1511 = vld [vmem:[%s1507 + $0x18] sm:$0xff]
    %v1512 = vld [vmem:[%s1507 + $0x20] sm:$0xff]
    %v1513 = vld [vmem:[%s1507 + $0x28] sm:$0xff]
    %v1514 = vld [vmem:[%s1507 + $0x30] sm:$0xff]
    %v1515 = vld [vmem:[%s1507 + $0x38] sm:$0xff]
    %v1516 = vld [vmem:[%s1507 + $0x40] sm:$0xff]
    %v1517 = vld [vmem:[%s1507 + $0x48] sm:$0xff]
    %v1518 = vld [vmem:[%s1507 + $0x50] sm:$0xff]
    %v1519 = vld [vmem:[%s1507 + $0x58] sm:$0xff]
    %v1520 = vld [vmem:[%s1507 + $0x60] sm:$0xff]
    %v1521 = vld [vmem:[%s1507 + $0x68] sm:$0xff]
    %v1522 = vld [vmem:[%s1507 + $0x70] sm:$0xff]
    %v1523 = vld [vmem:[%s1507 + $0x78] sm:$0xff]
    %v1524 = vld [vmem:[%s1507 + $0x80] sm:$0xff]
    %v1525 = vld [vmem:[%s1507 + $0x88] sm:$0xff]
    %v1526 = vld [vmem:[%s1507 + $0x90] sm:$0xff]
    %v1527 = vld [vmem:[%s1507 + $0x98] sm:$0xff]
    %v1528 = vld [vmem:[%s1507 + $0xa0] sm:$0xff]
    %v1529 = vld [vmem:[%s1507 + $0xa8] sm:$0xff]
    %v1530 = vld [vmem:[%s1507 + $0xb0] sm:$0xff]
    %v1531 = vld [vmem:[%s1507 + $0xb8] sm:$0xff]
    %v1532 = vld [vmem:[%s1507 + $0xc0] sm:$0xff]
    %v1533 = vld [vmem:[%s1507 + $0xc8] sm:$0xff]
    %v1534 = vld [vmem:[%s1507 + $0xd0] sm:$0xff]
    %v1535 = vld [vmem:[%s1507 + $0xd8] sm:$0xff]
    %v1536 = vld [vmem:[%s1507 + $0xe0] sm:$0xff]
    %v1537 = vld [vmem:[%s1507 + $0xe8] sm:$0xff]
    %v1538 = vld [vmem:[%s1507 + $0xf0] sm:$0xff]
    %v1539 = vld [vmem:[%s1507 + $0xf8] sm:$0xff]
    %s1540 = scalar_lea.vmem [#allocation7], 10
    %v1541 = vld [vmem:[%s1540] sm:$0x3]
    %v1543 = vlaneseq
    %v1544 = vshrl.u32 %v1543, 7
    %v1545 = vsub.s32 0, %v1544
    %v1546 = vrot.slane %v1541, %v1545
    %v1547 = vlaneseq
    %v1548 = vshrl.u32 %v1547, 7
    %v1549 = vsub.s32 1, %v1548
    %v1550 = vrot.slane %v1541, %v1549
    %v1585 = vunpack.c.l.b16 %v1508
    %v1586 = vunpack.c.h.b16 %v1508
    %v1587 = vunpack.c.l.b16 %v1509
    %v1588 = vunpack.c.h.b16 %v1509
    %v1589 = vunpack.c.l.b16 %v1510
    %v1590 = vunpack.c.h.b16 %v1510
    %v1591 = vunpack.c.l.b16 %v1511
    %v1592 = vunpack.c.h.b16 %v1511
    %v1593 = vunpack.c.l.b16 %v1512
    %v1594 = vunpack.c.h.b16 %v1512
    %v1595 = vunpack.c.l.b16 %v1513
    %v1596 = vunpack.c.h.b16 %v1513
    %v1597 = vunpack.c.l.b16 %v1514
    %v1598 = vunpack.c.h.b16 %v1514
    %v1599 = vunpack.c.l.b16 %v1515
    %v1600 = vunpack.c.h.b16 %v1515
    %v1601 = vunpack.c.l.b16 %v1516
    %v1602 = vunpack.c.h.b16 %v1516
    %v1603 = vunpack.c.l.b16 %v1517
    %v1604 = vunpack.c.h.b16 %v1517
    %v1605 = vunpack.c.l.b16 %v1518
    %v1606 = vunpack.c.h.b16 %v1518
    %v1607 = vunpack.c.l.b16 %v1519
    %v1608 = vunpack.c.h.b16 %v1519
    %v1609 = vunpack.c.l.b16 %v1520
    %v1610 = vunpack.c.h.b16 %v1520
    %v1611 = vunpack.c.l.b16 %v1521
    %v1612 = vunpack.c.h.b16 %v1521
    %v1613 = vunpack.c.l.b16 %v1522
    %v1614 = vunpack.c.h.b16 %v1522
    %v1615 = vunpack.c.l.b16 %v1523
    %v1616 = vunpack.c.h.b16 %v1523
    %v1617 = vunpack.c.l.b16 %v1524
    %v1618 = vunpack.c.h.b16 %v1524
    %v1619 = vunpack.c.l.b16 %v1525
    %v1620 = vunpack.c.h.b16 %v1525
    %v1621 = vunpack.c.l.b16 %v1526
    %v1622 = vunpack.c.h.b16 %v1526
    %v1623 = vunpack.c.l.b16 %v1527
    %v1624 = vunpack.c.h.b16 %v1527
    %v1625 = vunpack.c.l.b16 %v1528
    %v1626 = vunpack.c.h.b16 %v1528
    %v1627 = vunpack.c.l.b16 %v1529
    %v1628 = vunpack.c.h.b16 %v1529
    %v1629 = vunpack.c.l.b16 %v1530
    %v1630 = vunpack.c.h.b16 %v1530
    %v1631 = vunpack.c.l.b16 %v1531
    %v1632 = vunpack.c.h.b16 %v1531
    %v1633 = vunpack.c.l.b16 %v1532
    %v1634 = vunpack.c.h.b16 %v1532
    %v1635 = vunpack.c.l.b16 %v1533
    %v1636 = vunpack.c.h.b16 %v1533
    %v1637 = vunpack.c.l.b16 %v1534
    %v1638 = vunpack.c.h.b16 %v1534
    %v1639 = vunpack.c.l.b16 %v1535
    %v1640 = vunpack.c.h.b16 %v1535
    %v1641 = vunpack.c.l.b16 %v1536
    %v1642 = vunpack.c.h.b16 %v1536
    %v1643 = vunpack.c.l.b16 %v1537
    %v1644 = vunpack.c.h.b16 %v1537
    %v1645 = vunpack.c.l.b16 %v1538
    %v1646 = vunpack.c.h.b16 %v1538
    %v1647 = vunpack.c.l.b16 %v1539
    %v1648 = vunpack.c.h.b16 %v1539
    %v1649 = vpack.c.b16 %v1587, %v1585
    %v1650 = vpack.c.b16 %v1588, %v1586
    %v1651 = vpack.c.b16 %v1591, %v1589
    %v1652 = vpack.c.b16 %v1592, %v1590
    %v1653 = vpack.c.b16 %v1595, %v1593
    %v1654 = vpack.c.b16 %v1596, %v1594
    %v1655 = vpack.c.b16 %v1599, %v1597
    %v1656 = vpack.c.b16 %v1600, %v1598
    %v1657 = vpack.c.b16 %v1603, %v1601
    %v1658 = vpack.c.b16 %v1604, %v1602
    %v1659 = vpack.c.b16 %v1607, %v1605
    %v1660 = vpack.c.b16 %v1608, %v1606
    %v1661 = vpack.c.b16 %v1611, %v1609
    %v1662 = vpack.c.b16 %v1612, %v1610
    %v1663 = vpack.c.b16 %v1615, %v1613
    %v1664 = vpack.c.b16 %v1616, %v1614
    %v1665 = vpack.c.b16 %v1619, %v1617
    %v1666 = vpack.c.b16 %v1620, %v1618
    %v1667 = vpack.c.b16 %v1623, %v1621
    %v1668 = vpack.c.b16 %v1624, %v1622
    %v1669 = vpack.c.b16 %v1627, %v1625
    %v1670 = vpack.c.b16 %v1628, %v1626
    %v1671 = vpack.c.b16 %v1631, %v1629
    %v1672 = vpack.c.b16 %v1632, %v1630
    %v1673 = vpack.c.b16 %v1635, %v1633
    %v1674 = vpack.c.b16 %v1636, %v1634
    %v1675 = vpack.c.b16 %v1639, %v1637
    %v1676 = vpack.c.b16 %v1640, %v1638
    %v1677 = vpack.c.b16 %v1643, %v1641
    %v1678 = vpack.c.b16 %v1644, %v1642
    %v1679 = vpack.c.b16 %v1647, %v1645
    %v1680 = vpack.c.b16 %v1648, %v1646
    %1713 = vmatprep.subr.bf16.mxu0 %v1650
    %1714 = vmatpush1.bf16.msra.mxu0 %v1649
    %1715 = vmatprep.subr.bf16.mxu0 %v1652
    %1716 = vmatpush1.bf16.msra.mxu0 %v1651
    %1717 = vmatprep.subr.bf16.mxu0 %v1654
    %1718 = vmatpush1.bf16.msra.mxu0 %v1653
    %1719 = vmatprep.subr.bf16.mxu0 %v1656
    %1720 = vmatpush1.bf16.msra.mxu0 %v1655
    %1721 = vmatprep.subr.bf16.mxu0 %v1658
    %1722 = vmatpush1.bf16.msra.mxu0 %v1657
    %1723 = vmatprep.subr.bf16.mxu0 %v1660
    %1724 = vmatpush1.bf16.msra.mxu0 %v1659
    %1725 = vmatprep.subr.bf16.mxu0 %v1662
    %1726 = vmatpush1.bf16.msra.mxu0 %v1661
    %1727 = vmatprep.subr.bf16.mxu0 %v1664
    %1728 = vmatpush1.bf16.msra.mxu0 %v1663
    %1729 = vmatprep.subr.bf16.mxu0 %v1666
    %1730 = vmatpush1.bf16.msra.mxu0 %v1665
    %1731 = vmatprep.subr.bf16.mxu0 %v1668
    %1732 = vmatpush1.bf16.msra.mxu0 %v1667
    %1733 = vmatprep.subr.bf16.mxu0 %v1670
    %1734 = vmatpush1.bf16.msra.mxu0 %v1669
    %1735 = vmatprep.subr.bf16.mxu0 %v1672
    %1736 = vmatpush1.bf16.msra.mxu0 %v1671
    %1737 = vmatprep.subr.bf16.mxu0 %v1674
    %1738 = vmatpush1.bf16.msra.mxu0 %v1673
    %1739 = vmatprep.subr.bf16.mxu0 %v1676
    %1740 = vmatpush1.bf16.msra.mxu0 %v1675
    %1741 = vmatprep.subr.bf16.mxu0 %v1678
    %1742 = vmatpush1.bf16.msra.mxu0 %v1677
    %1743 = vmatprep.subr.bf16.mxu0 %v1680
    %1744 = vmatpush1.bf16.msra.mxu0 %v1679
    %1745 = vmatprep.mubr.bf16.mxu0 %v1506
    %1746 = vmatmul.mubr.bf16.gmra.mrb[0].mxu0 %v1505
    %v1747 = vpop.f32.mrb[0].mxu0
    %v1748 = vadd.f32 %v1546, %v1747
    %v1749 = vpop.f32.mrb[0].mxu0
    %v1750 = vadd.f32 %v1550, %v1749
    %v1751 = vpop.f32.mrb[0].mxu0
    %v1752 = vpop.f32.mrb[0].mxu0
    %1753 = vdwg.mxu0
    %v1754 = vmax.f32 %v1748, 0.0
    %v1755 = vmax.f32 %v1750, 0.0
    %v1756 = vadd.f32 %v1252, %v1754
    %v1757 = vadd.f32 %v1253, %v1755
    %v1758 = vpack.c.bf16 %v1756, %v1756
    %v1759 = vpack.c.bf16 %v1757, %v1757
    %v1760 = vld [vmem:[#allocation9] sm:$0xf]
    %v1761 = vld [vmem:[#allocation9 + $0x4] sm:$0xf]
    %v1762 = vld [vmem:[#allocation9 + $0x8] sm:$0xf]
    %v1763 = vld [vmem:[#allocation9 + $0xc] sm:$0xf]
    %v1764 = vld [vmem:[#allocation9 + $0x10] sm:$0xf]
    %v1765 = vld [vmem:[#allocation9 + $0x14] sm:$0xf]
    %v1766 = vld [vmem:[#allocation9 + $0x18] sm:$0xf]
    %v1767 = vld [vmem:[#allocation9 + $0x1c] sm:$0xf]
    %v1768 = vld [vmem:[#allocation9 + $0x20] sm:$0xf]
    %v1769 = vld [vmem:[#allocation9 + $0x24] sm:$0xf]
    %v1770 = vld [vmem:[#allocation9 + $0x28] sm:$0xf]
    %v1771 = vld [vmem:[#allocation9 + $0x2c] sm:$0xf]
    %v1772 = vld [vmem:[#allocation9 + $0x30] sm:$0xf]
    %v1773 = vld [vmem:[#allocation9 + $0x34] sm:$0xf]
    %v1774 = vld [vmem:[#allocation9 + $0x38] sm:$0xf]
    %v1775 = vld [vmem:[#allocation9 + $0x3c] sm:$0xf]
    %v1776 = vld [vmem:[#allocation9 + $0x40] sm:$0xf]
    %v1777 = vld [vmem:[#allocation9 + $0x44] sm:$0xf]
    %v1778 = vld [vmem:[#allocation9 + $0x48] sm:$0xf]
    %v1779 = vld [vmem:[#allocation9 + $0x4c] sm:$0xf]
    %v1780 = vld [vmem:[#allocation9 + $0x50] sm:$0xf]
    %v1781 = vld [vmem:[#allocation9 + $0x54] sm:$0xf]
    %v1782 = vld [vmem:[#allocation9 + $0x58] sm:$0xf]
    %v1783 = vld [vmem:[#allocation9 + $0x5c] sm:$0xf]
    %v1784 = vld [vmem:[#allocation9 + $0x60] sm:$0xf]
    %v1785 = vld [vmem:[#allocation9 + $0x64] sm:$0xf]
    %v1786 = vld [vmem:[#allocation9 + $0x68] sm:$0xf]
    %v1787 = vld [vmem:[#allocation9 + $0x6c] sm:$0xf]
    %v1788 = vld [vmem:[#allocation9 + $0x70] sm:$0xf]
    %v1789 = vld [vmem:[#allocation9 + $0x74] sm:$0xf]
    %v1790 = vld [vmem:[#allocation9 + $0x78] sm:$0xf]
    %v1791 = vld [vmem:[#allocation9 + $0x7c] sm:$0xf]
    %v1792 = vld [vmem:[%s6] sm:$0x1]
    %v1794 = vlaneseq
    %v1795 = vshrl.u32 %v1794, 7
    %v1796 = vsub.s32 0, %v1795
    %v1797 = vrot.slane %v1792, %v1796
    %v1831 = vunpack.c.l.b16 %v1760
    %v1832 = vunpack.c.l.b16 %v1761
    %v1833 = vunpack.c.l.b16 %v1762
    %v1834 = vunpack.c.l.b16 %v1763
    %v1835 = vunpack.c.l.b16 %v1764
    %v1836 = vunpack.c.l.b16 %v1765
    %v1837 = vunpack.c.l.b16 %v1766
    %v1838 = vunpack.c.l.b16 %v1767
    %v1839 = vunpack.c.l.b16 %v1768
    %v1840 = vunpack.c.l.b16 %v1769
    %v1841 = vunpack.c.l.b16 %v1770
    %v1842 = vunpack.c.l.b16 %v1771
    %v1843 = vunpack.c.l.b16 %v1772
    %v1844 = vunpack.c.l.b16 %v1773
    %v1845 = vunpack.c.l.b16 %v1774
    %v1846 = vunpack.c.l.b16 %v1775
    %v1847 = vunpack.c.l.b16 %v1776
    %v1848 = vunpack.c.l.b16 %v1777
    %v1849 = vunpack.c.l.b16 %v1778
    %v1850 = vunpack.c.l.b16 %v1779
    %v1851 = vunpack.c.l.b16 %v1780
    %v1852 = vunpack.c.l.b16 %v1781
    %v1853 = vunpack.c.l.b16 %v1782
    %v1854 = vunpack.c.l.b16 %v1783
    %v1855 = vunpack.c.l.b16 %v1784
    %v1856 = vunpack.c.l.b16 %v1785
    %v1857 = vunpack.c.l.b16 %v1786
    %v1858 = vunpack.c.l.b16 %v1787
    %v1859 = vunpack.c.l.b16 %v1788
    %v1860 = vunpack.c.l.b16 %v1789
    %v1861 = vunpack.c.l.b16 %v1790
    %v1862 = vunpack.c.l.b16 %v1791
    %v1863 = vpack.c.b16 %v1832, %v1831
    %v1864 = vpack.c.b16 %v1834, %v1833
    %v1865 = vpack.c.b16 %v1836, %v1835
    %v1866 = vpack.c.b16 %v1838, %v1837
    %v1867 = vpack.c.b16 %v1840, %v1839
    %v1868 = vpack.c.b16 %v1842, %v1841
    %v1869 = vpack.c.b16 %v1844, %v1843
    %v1870 = vpack.c.b16 %v1846, %v1845
    %v1871 = vpack.c.b16 %v1848, %v1847
    %v1872 = vpack.c.b16 %v1850, %v1849
    %v1873 = vpack.c.b16 %v1852, %v1851
    %v1874 = vpack.c.b16 %v1854, %v1853
    %v1875 = vpack.c.b16 %v1856, %v1855
    %v1876 = vpack.c.b16 %v1858, %v1857
    %v1877 = vpack.c.b16 %v1860, %v1859
    %v1878 = vpack.c.b16 %v1862, %v1861
    %1895 = vmatprep.subr.bf16.mxu0 0
    %1896 = vmatpush1.bf16.msra.mxu0 %v1863
    %1897 = vmatprep.subr.bf16.mxu0 0
    %1898 = vmatpush1.bf16.msra.mxu0 %v1864
    %1899 = vmatprep.subr.bf16.mxu0 0
    %1900 = vmatpush1.bf16.msra.mxu0 %v1865
    %1901 = vmatprep.subr.bf16.mxu0 0
    %1902 = vmatpush1.bf16.msra.mxu0 %v1866
    %1903 = vmatprep.subr.bf16.mxu0 0
    %1904 = vmatpush1.bf16.msra.mxu0 %v1867
    %1905 = vmatprep.subr.bf16.mxu0 0
    %1906 = vmatpush1.bf16.msra.mxu0 %v1868
    %1907 = vmatprep.subr.bf16.mxu0 0
    %1908 = vmatpush1.bf16.msra.mxu0 %v1869
    %1909 = vmatprep.subr.bf16.mxu0 0
    %1910 = vmatpush1.bf16.msra.mxu0 %v1870
    %1911 = vmatprep.subr.bf16.mxu0 0
    %1912 = vmatpush1.bf16.msra.mxu0 %v1871
    %1913 = vmatprep.subr.bf16.mxu0 0
    %1914 = vmatpush1.bf16.msra.mxu0 %v1872
    %1915 = vmatprep.subr.bf16.mxu0 0
    %1916 = vmatpush1.bf16.msra.mxu0 %v1873
    %1917 = vmatprep.subr.bf16.mxu0 0
    %1918 = vmatpush1.bf16.msra.mxu0 %v1874
    %1919 = vmatprep.subr.bf16.mxu0 0
    %1920 = vmatpush1.bf16.msra.mxu0 %v1875
    %1921 = vmatprep.subr.bf16.mxu0 0
    %1922 = vmatpush1.bf16.msra.mxu0 %v1876
    %1923 = vmatprep.subr.bf16.mxu0 0
    %1924 = vmatpush1.bf16.msra.mxu0 %v1877
    %1925 = vmatprep.subr.bf16.mxu0 0
    %1926 = vmatpush1.bf16.msra.mxu0 %v1878
    %1927 = vmatprep.mubr.bf16.mxu0 %v1759
    %1928 = vmatmul.mubr.bf16.gmra.mrb[0].mxu0 %v1758
    %v1929 = vpop.f32.mrb[0].mxu0
    %v1930 = vadd.f32 %v1797, %v1929
    %v1931 = vpop.f32.mrb[0].mxu0
    %v1932 = vpop.f32.mrb[0].mxu0
    %v1933 = vpop.f32.mrb[0].mxu0
    %1934 = vdwg.mxu0
    %v1935 = vxor.u32 %v1930, 2147483648
    %v1936 = vmul.f32 %v1935, 1.442695
    %v1937 = vpow.pop %v1936
    %v1938 = vadd.f32 %v1937, 1.0
    %v1939 = vrcp.pop %v1938
    %v1940 = vmul.f32 1.0, %v1939
    %1941 = vxpose.xlu0.b32.start [1/16] %v1940, 128
    %1942 = vxpose.xlu0.b32.cont [2/16] 0.0, 128
    %1943 = vxpose.xlu0.b32.cont [3/16] 0.0, 128
    %1944 = vxpose.xlu0.b32.cont [4/16] 0.0, 128
    %1945 = vxpose.xlu0.b32.cont [5/16] 0.0, 128
    %1946 = vxpose.xlu0.b32.cont [6/16] 0.0, 128
    %1947 = vxpose.xlu0.b32.cont [7/16] 0.0, 128
    %1948 = vxpose.xlu0.b32.cont [8/16] 0.0, 128
    %1949 = vxpose.xlu0.b32.cont [9/16] 0.0, 128
    %1950 = vxpose.xlu0.b32.cont [10/16] 0.0, 128
    %1951 = vxpose.xlu0.b32.cont [11/16] 0.0, 128
    %1952 = vxpose.xlu0.b32.cont [12/16] 0.0, 128
    %1953 = vxpose.xlu0.b32.cont [13/16] 0.0, 128
    %1954 = vxpose.xlu0.b32.cont [14/16] 0.0, 128
    %1955 = vxpose.xlu0.b32.cont [15/16] 0.0, 128
    %1956 = vxpose.xlu0.b32.end [16/16] 0.0, 128
    %v1957 = vpop.trf.xlu0
    %v1958 = vpop.trf.xlu0
    %v1959 = vpop.trf.xlu0
    %v1960 = vpop.trf.xlu0
    %v1961 = vpop.trf.xlu0
    %v1962 = vpop.trf.xlu0
    %v1963 = vpop.trf.xlu0
    %v1964 = vpop.trf.xlu0
    %v1965 = vpop.trf.xlu0
    %v1966 = vpop.trf.xlu0
    %v1967 = vpop.trf.xlu0
    %v1968 = vpop.trf.xlu0
    %v1969 = vpop.trf.xlu0
    %v1970 = vpop.trf.xlu0
    %v1971 = vpop.trf.xlu0
    %v1972 = vpop.trf.xlu0
    %vm1973 = vcmask 64512
    %1974 = vst.msk [vmem:[%s7] sm:$0xff] %vm1973, %v1957
    // Predicated region
    $region50: #{looking_forward.1} parent=1 // pred_check
      _
    $region51: #{looking_forward.1} parent=1 // pred_check_branch
      %1976 = sbr.rel (0) target = $region53
    $region52: #{looking_forward.1} parent=1 // pred_region
      _
    $region53: #{looking_forward.1} parent=1 // pred_fallthru
      _
    // Predicated region
    $region54: #{looking_forward.1} parent=1 // pred_check
      _
    $region55: #{looking_forward.1} parent=1 // pred_check_branch
      %1978 = sbr.rel (0) target = $region57
    $region56: #{looking_forward.1} parent=1 // pred_region
      _
    $region57: #{looking_forward.1} parent=1 // pred_fallthru
      _
    %1979 = vsyncpa [#allocation3], 1
    %1980 = vsyncpa [#allocation5], 1
    %1981 = vsyncpa [#allocation8], 1

</llo_original>
